<compile_context>
chip_gen: v5e
topology: v5e:2x2
jax: 0.10.0
libtpu: 0.0.40
codegen_flags: <defaults>
</compile_context>

<pallas_src>
import functools

import jax
import jax.numpy as jnp
from jax.experimental import pallas as pl
from jax.experimental.pallas import tpu as pltpu


K1 = 4          # conv1 kernel size (1 -> 128 channels)
K2 = 2          # conv2 kernel size (128 -> 64 channels)
C1 = 128        # conv1 out channels
C2 = 64         # conv2 out channels
FC_HIDDEN = 64  # fc1 hidden size


def _vmem_spec():
    return pl.BlockSpec(memory_space=pltpu.MemorySpace.VMEM)


# ----------------------------- fused Pallas kernel --------------------------

def _dqn_fused_kernel(x_ref, w1_ref, b1_ref, w2_ref, b2_ref,
                      wf1_ref, bf1_ref, wf2_ref, bf2_ref, o_ref, *, H, W):
    """Whole DQN forward for one small batch; single program, no grid.

    x_ref   : (B, H*W)       f32  -- board, row-major (NCHW with C=1 flattened)
    w1_ref  : (K1*K1, 128)   rows ordered (kh, kw)
    b1_ref  : (1, 128)
    w2_ref  : (K2*K2, 128, 64) indexed by kh*K2 + kw
    b2_ref  : (1, 64)
    wf1_ref : (H2*W2, 64, 64)  fc1 weight with the NCHW flatten folded in
    bf1_ref : (1, 64)
    wf2_ref : (64, n_actions)
    bf2_ref : (1, n_actions)
    o_ref   : (B, n_actions)
    """
    B = x_ref.shape[0]
    H1, W1 = H - K1 + 1, W - K1 + 1          # conv1 output spatial (3, 4)
    H2, W2 = H1 - K2 + 1, W1 - K2 + 1        # conv2 output spatial (2, 3)

    x = x_ref[...]                           # (B, H*W)
    b1 = b1_ref[...]                         # (1, 128)
    b2 = b2_ref[...]                         # (1, 64)

    # Hoist weight loads out of the unrolled loops.
    w1_blocks = [w1_ref[kh * K1:(kh + 1) * K1, :] for kh in range(K1)]   # (4,128)
    w2_blocks = [w2_ref[k] for k in range(K2 * K2)]                      # (128,64)
    wf1_blocks = [wf1_ref[s] for s in range(H2 * W2)]                    # (64,64)

    # ---- conv1: Conv2d(1, 128, k=4) + ReLU (in-kernel im2col, MXU) ---------
    # For each output position (i, j): 4 accumulating (B,4)@(4,128) matmuls.
    y1 = {}
    for i in range(H1):
        for j in range(W1):
            acc = jnp.zeros((B, C1), jnp.float32)
            for kh in range(K1):
                c0 = (i + kh) * W + j
                acc = acc + jnp.dot(x[:, c0:c0 + K1], w1_blocks[kh],
                                    preferred_element_type=jnp.float32)
            y1[(i, j)] = jnp.maximum(acc + b1, 0.0)                      # (B,128)

    # ---- conv2 (Conv2d(128,64,k=2) + ReLU) fused with NCHW-flatten + fc1 ---
    # For each conv2 output position s: 4 accumulating (B,128)@(128,64)
    # matmuls; fc1 is a running sum over s of (B,64)@(64,64) because the NCHW
    # flatten permutation was folded into wf1 at param-prep time.
    h = jnp.zeros((B, FC_HIDDEN), jnp.float32)
    for oi in range(H2):
        for oj in range(W2):
            acc = jnp.zeros((B, C2), jnp.float32)
            for kh in range(K2):
                for kw in range(K2):
                    acc = acc + jnp.dot(y1[(oi + kh, oj + kw)],
                                        w2_blocks[kh * K2 + kw],
                                        preferred_element_type=jnp.float32)
            y2_s = jnp.maximum(acc + b2, 0.0)                            # (B,64)
            s = oi * W2 + oj
            h = h + jnp.dot(y2_s, wf1_blocks[s],
                            preferred_element_type=jnp.float32)

    h = jnp.maximum(h + bf1_ref[...], 0.0)                               # (B,64)

    # ---- fc2: Linear(64, n_actions) ----------------------------------------
    o_ref[...] = (jnp.dot(h, wf2_ref[...],
                          preferred_element_type=jnp.float32)
                  + bf2_ref[...])


# ------------------------------ params & wrapper ----------------------------

def init_params(key, view_shape, n_actions):
    """Parameters in the PyTorch layout (OIHW convs, (out, in) linears)."""
    oh = view_shape[0] - K1 + 1 - K2 + 1
    ow = view_shape[1] - K1 + 1 - K2 + 1
    view_out = C2 * oh * ow
    ks = jax.random.split(key, 8)
    s = 0.05
    return {
        "w_conv1": jax.random.normal(ks[0], (C1, 1, K1, K1), jnp.float32) * s,
        "b_conv1": jax.random.normal(ks[1], (C1,), jnp.float32) * s,
        "w_conv2": jax.random.normal(ks[2], (C2, C1, K2, K2), jnp.float32) * s,
        "b_conv2": jax.random.normal(ks[3], (C2,), jnp.float32) * s,
        "w_fc1": jax.random.normal(ks[4], (FC_HIDDEN, view_out), jnp.float32) * s,
        "b_fc1": jax.random.normal(ks[5], (FC_HIDDEN,), jnp.float32) * s,
        "w_fc2": jax.random.normal(ks[6], (n_actions, FC_HIDDEN), jnp.float32) * s,
        "b_fc2": jax.random.normal(ks[7], (n_actions,), jnp.float32) * s,
    }


def prepare_params(p, view_shape):
    """ONE-TIME re-layout of PyTorch-style params into matmul-ready form."""
    oh = view_shape[0] - K1 + 1 - K2 + 1
    ow = view_shape[1] - K1 + 1 - K2 + 1
    n_spatial = oh * ow
    # conv1 OIHW (128,1,4,4) -> rows ordered (kh, kw), cols = cout: (16, 128)
    w1 = jnp.transpose(p["w_conv1"], (2, 3, 1, 0)).reshape(K1 * K1, C1)
    # conv2 OIHW (64,128,2,2) -> (kh*K2+kw, cin, cout): (4, 128, 64)
    w2 = jnp.transpose(p["w_conv2"], (2, 3, 1, 0)).reshape(K2 * K2, C1, C2)
    # fc1 (out, C2*oh*ow) with PyTorch NCHW flatten index = c*n_spatial + s
    # -> (s, c, out) so fc1 accumulates over conv2 spatial positions.
    wf1 = jnp.transpose(p["w_fc1"].reshape(FC_HIDDEN, C2, n_spatial), (2, 1, 0))
    return {
        "w1": w1, "b1": p["b_conv1"].reshape(1, C1),
        "w2": w2, "b2": p["b_conv2"].reshape(1, C2),
        "wf1": wf1, "bf1": p["b_fc1"].reshape(1, FC_HIDDEN),
        "wf2": p["w_fc2"].T, "bf2": p["b_fc2"].reshape(1, -1),
    }


def dqn_forward(x, pp):
    """x: (B, 1, H, W) float32 (NCHW, same as the PyTorch module)."""
    B, _, H, W = x.shape
    x2 = x.reshape(B, H * W)                 # C=1 -> free reshape, no copy
    n_actions = pp["wf2"].shape[1]
    kernel = functools.partial(_dqn_fused_kernel, H=H, W=W)
    # TODO(synk): for large replay batches, add a grid over B (tile ~256 rows,
    # dimension_semantics=("parallel",)); at B=4 a grid is pure overhead.
    return pl.pallas_call(
        kernel,
        out_shape=jax.ShapeDtypeStruct((B, n_actions), jnp.float32),
        in_specs=[_vmem_spec()] * 9,
        out_specs=_vmem_spec(),
    )(x2, pp["w1"], pp["b1"], pp["w2"], pp["b2"],
      pp["wf1"], pp["bf1"], pp["wf2"], pp["bf2"])


# ------------------------------ pure-JAX reference --------------------------

def dqn_reference(x, p):
    hp = jax.lax.Precision.HIGHEST
    dn = ("NCHW", "OIHW", "NCHW")
    y = jax.lax.conv_general_dilated(x, p["w_conv1"], (1, 1), "VALID",
                                     dimension_numbers=dn, precision=hp)
    y = jnp.maximum(y + p["b_conv1"][None, :, None, None], 0.0)
    y = jax.lax.conv_general_dilated(y, p["w_conv2"], (1, 1), "VALID",
                                     dimension_numbers=dn, precision=hp)
    y = jnp.maximum(y + p["b_conv2"][None, :, None, None], 0.0)
    flat = y.reshape(x.shape[0], -1)
    h = jnp.maximum(jnp.dot(flat, p["w_fc1"].T, precision=hp) + p["b_fc1"], 0.0)
    return jnp.dot(h, p["w_fc2"].T, precision=hp) + p["b_fc2"]


# ----------------------------------- main ------------------------------------

if __name__ == "__main__":
    view_shape = (6, 7)   # Connect4 board
    n_actions = 7
    batch = 4

    key = jax.random.PRNGKey(0)
    kp, kx = jax.random.split(key)
    params = init_params(kp, view_shape, n_actions)
    prepped = prepare_params(params, view_shape)     # one-time weight re-layout
    x = jax.random.normal(kx, (batch, 1, view_shape[0], view_shape[1]),
                          jnp.float32)

    out = jax.jit(dqn_forward)(x, prepped)
    out = jax.block_until_ready(out)

    ref = dqn_reference(x, params)
    assert out.shape == (batch, n_actions), out.shape
    assert jnp.allclose(out, ref, atol=1e-2, rtol=1e-2), (out, ref)

    print("KERNEL_OK")
</pallas_src>

<mosaic_0001>
module attributes {stable_mosaic.version = 11 : i64} {
  func.func @_dqn_fused_kernel(%arg0: memref<4x42xf32, #tpu.memory_space<vmem>>, %arg1: memref<16x128xf32, #tpu.memory_space<vmem>>, %arg2: memref<1x128xf32, #tpu.memory_space<vmem>>, %arg3: memref<4x128x64xf32, #tpu.memory_space<vmem>>, %arg4: memref<1x64xf32, #tpu.memory_space<vmem>>, %arg5: memref<6x64x64xf32, #tpu.memory_space<vmem>>, %arg6: memref<1x64xf32, #tpu.memory_space<vmem>>, %arg7: memref<64x7xf32, #tpu.memory_space<vmem>>, %arg8: memref<1x7xf32, #tpu.memory_space<vmem>>, %arg9: memref<4x7xf32, #tpu.memory_space<vmem>>) attributes {dimension_semantics = [], scalar_prefetch = 0 : i64, scratch_operands = 0 : i64, tpu.core_type = #tpu.core_type<tc>} {
    %c0 = arith.constant 0 : index
    %c0_0 = arith.constant 0 : index
    %0 = vector.load %arg0[%c0, %c0_0] : memref<4x42xf32, #tpu.memory_space<vmem>>, vector<4x42xf32>
    %c0_1 = arith.constant 0 : index
    %c0_2 = arith.constant 0 : index
    %1 = vector.load %arg2[%c0_1, %c0_2] : memref<1x128xf32, #tpu.memory_space<vmem>>, vector<1x128xf32>
    %c0_3 = arith.constant 0 : index
    %c0_4 = arith.constant 0 : index
    %2 = vector.load %arg4[%c0_3, %c0_4] : memref<1x64xf32, #tpu.memory_space<vmem>>, vector<1x64xf32>
    %c0_5 = arith.constant 0 : index
    %c0_6 = arith.constant 0 : index
    %3 = vector.load %arg1[%c0_5, %c0_6] : memref<16x128xf32, #tpu.memory_space<vmem>>, vector<4x128xf32>
    %c4 = arith.constant 4 : index
    %c0_7 = arith.constant 0 : index
    %4 = vector.load %arg1[%c4, %c0_7] : memref<16x128xf32, #tpu.memory_space<vmem>>, vector<4x128xf32>
    %c8 = arith.constant 8 : index
    %c0_8 = arith.constant 0 : index
    %5 = vector.load %arg1[%c8, %c0_8] : memref<16x128xf32, #tpu.memory_space<vmem>>, vector<4x128xf32>
    %c12 = arith.constant 12 : index
    %c0_9 = arith.constant 0 : index
    %6 = vector.load %arg1[%c12, %c0_9] : memref<16x128xf32, #tpu.memory_space<vmem>>, vector<4x128xf32>
    %c0_10 = arith.constant 0 : index
    %c0_11 = arith.constant 0 : index
    %c0_12 = arith.constant 0 : index
    %7 = vector.load %arg3[%c0_10, %c0_11, %c0_12] : memref<4x128x64xf32, #tpu.memory_space<vmem>>, vector<1x128x64xf32>
    %8 = vector.shape_cast %7 : vector<1x128x64xf32> to vector<128x64xf32>
    %c1 = arith.constant 1 : index
    %c0_13 = arith.constant 0 : index
    %c0_14 = arith.constant 0 : index
    %9 = vector.load %arg3[%c1, %c0_13, %c0_14] : memref<4x128x64xf32, #tpu.memory_space<vmem>>, vector<1x128x64xf32>
    %10 = vector.shape_cast %9 : vector<1x128x64xf32> to vector<128x64xf32>
    %c2 = arith.constant 2 : index
    %c0_15 = arith.constant 0 : index
    %c0_16 = arith.constant 0 : index
    %11 = vector.load %arg3[%c2, %c0_15, %c0_16] : memref<4x128x64xf32, #tpu.memory_space<vmem>>, vector<1x128x64xf32>
    %12 = vector.shape_cast %11 : vector<1x128x64xf32> to vector<128x64xf32>
    %c3 = arith.constant 3 : index
    %c0_17 = arith.constant 0 : index
    %c0_18 = arith.constant 0 : index
    %13 = vector.load %arg3[%c3, %c0_17, %c0_18] : memref<4x128x64xf32, #tpu.memory_space<vmem>>, vector<1x128x64xf32>
    %14 = vector.shape_cast %13 : vector<1x128x64xf32> to vector<128x64xf32>
    %c0_19 = arith.constant 0 : index
    %c0_20 = arith.constant 0 : index
    %c0_21 = arith.constant 0 : index
    %15 = vector.load %arg5[%c0_19, %c0_20, %c0_21] : memref<6x64x64xf32, #tpu.memory_space<vmem>>, vector<1x64x64xf32>
    %16 = vector.shape_cast %15 : vector<1x64x64xf32> to vector<64x64xf32>
    %c1_22 = arith.constant 1 : index
    %c0_23 = arith.constant 0 : index
    %c0_24 = arith.constant 0 : index
    %17 = vector.load %arg5[%c1_22, %c0_23, %c0_24] : memref<6x64x64xf32, #tpu.memory_space<vmem>>, vector<1x64x64xf32>
    %18 = vector.shape_cast %17 : vector<1x64x64xf32> to vector<64x64xf32>
    %c2_25 = arith.constant 2 : index
    %c0_26 = arith.constant 0 : index
    %c0_27 = arith.constant 0 : index
    %19 = vector.load %arg5[%c2_25, %c0_26, %c0_27] : memref<6x64x64xf32, #tpu.memory_space<vmem>>, vector<1x64x64xf32>
    %20 = vector.shape_cast %19 : vector<1x64x64xf32> to vector<64x64xf32>
    %c3_28 = arith.constant 3 : index
    %c0_29 = arith.constant 0 : index
    %c0_30 = arith.constant 0 : index
    %21 = vector.load %arg5[%c3_28, %c0_29, %c0_30] : memref<6x64x64xf32, #tpu.memory_space<vmem>>, vector<1x64x64xf32>
    %22 = vector.shape_cast %21 : vector<1x64x64xf32> to vector<64x64xf32>
    %c4_31 = arith.constant 4 : index
    %c0_32 = arith.constant 0 : index
    %c0_33 = arith.constant 0 : index
    %23 = vector.load %arg5[%c4_31, %c0_32, %c0_33] : memref<6x64x64xf32, #tpu.memory_space<vmem>>, vector<1x64x64xf32>
    %24 = vector.shape_cast %23 : vector<1x64x64xf32> to vector<64x64xf32>
    %c5 = arith.constant 5 : index
    %c0_34 = arith.constant 0 : index
    %c0_35 = arith.constant 0 : index
    %25 = vector.load %arg5[%c5, %c0_34, %c0_35] : memref<6x64x64xf32, #tpu.memory_space<vmem>>, vector<1x64x64xf32>
    %26 = vector.shape_cast %25 : vector<1x64x64xf32> to vector<64x64xf32>
    %cst = arith.constant 0.000000e+00 : f32
    %27 = vector.broadcast %cst : f32 to vector<4x128xf32>
    %28 = vector.extract_strided_slice %0 {offsets = [0, 0], sizes = [4, 4], strides = [1, 1]} : vector<4x42xf32> to vector<4x4xf32>
    %cst_36 = arith.constant dense<0.000000e+00> : vector<4x128xf32>
    %29 = tpu.matmul %28, %3, %cst_36 {dimension_numbers = #tpu.dot_dimension_numbers<[1], [0], [0], [1], [0, 0, 1, 1], [], []>} : vector<4x4xf32>, vector<4x128xf32>, vector<4x128xf32> -> vector<4x128xf32>
    %30 = arith.addf %27, %29 : vector<4x128xf32>
    %31 = vector.extract_strided_slice %0 {offsets = [0, 7], sizes = [4, 4], strides = [1, 1]} : vector<4x42xf32> to vector<4x4xf32>
    %cst_37 = arith.constant dense<0.000000e+00> : vector<4x128xf32>
    %32 = tpu.matmul %31, %4, %cst_37 {dimension_numbers = #tpu.dot_dimension_numbers<[1], [0], [0], [1], [0, 0, 1, 1], [], []>} : vector<4x4xf32>, vector<4x128xf32>, vector<4x128xf32> -> vector<4x128xf32>
    %33 = arith.addf %30, %32 : vector<4x128xf32>
    %34 = vector.extract_strided_slice %0 {offsets = [0, 14], sizes = [4, 4], strides = [1, 1]} : vector<4x42xf32> to vector<4x4xf32>
    %cst_38 = arith.constant dense<0.000000e+00> : vector<4x128xf32>
    %35 = tpu.matmul %34, %5, %cst_38 {dimension_numbers = #tpu.dot_dimension_numbers<[1], [0], [0], [1], [0, 0, 1, 1], [], []>} : vector<4x4xf32>, vector<4x128xf32>, vector<4x128xf32> -> vector<4x128xf32>
    %36 = arith.addf %33, %35 : vector<4x128xf32>
    %37 = vector.extract_strided_slice %0 {offsets = [0, 21], sizes = [4, 4], strides = [1, 1]} : vector<4x42xf32> to vector<4x4xf32>
    %cst_39 = arith.constant dense<0.000000e+00> : vector<4x128xf32>
    %38 = tpu.matmul %37, %6, %cst_39 {dimension_numbers = #tpu.dot_dimension_numbers<[1], [0], [0], [1], [0, 0, 1, 1], [], []>} : vector<4x4xf32>, vector<4x128xf32>, vector<4x128xf32> -> vector<4x128xf32>
    %39 = arith.addf %36, %38 : vector<4x128xf32>
    %40 = vector.broadcast %1 : vector<1x128xf32> to vector<4x128xf32>
    %41 = arith.addf %39, %40 : vector<4x128xf32>
    %cst_40 = arith.constant 0.000000e+00 : f32
    %42 = vector.broadcast %cst_40 : f32 to vector<4x128xf32>
    %43 = arith.maximumf %41, %42 : vector<4x128xf32>
    %cst_41 = arith.constant 0.000000e+00 : f32
    %44 = vector.broadcast %cst_41 : f32 to vector<4x128xf32>
    %45 = vector.extract_strided_slice %0 {offsets = [0, 1], sizes = [4, 4], strides = [1, 1]} : vector<4x42xf32> to vector<4x4xf32>
    %cst_42 = arith.constant dense<0.000000e+00> : vector<4x128xf32>
    %46 = tpu.matmul %45, %3, %cst_42 {dimension_numbers = #tpu.dot_dimension_numbers<[1], [0], [0], [1], [0, 0, 1, 1], [], []>} : vector<4x4xf32>, vector<4x128xf32>, vector<4x128xf32> -> vector<4x128xf32>
    %47 = arith.addf %44, %46 : vector<4x128xf32>
    %48 = vector.extract_strided_slice %0 {offsets = [0, 8], sizes = [4, 4], strides = [1, 1]} : vector<4x42xf32> to vector<4x4xf32>
    %cst_43 = arith.constant dense<0.000000e+00> : vector<4x128xf32>
    %49 = tpu.matmul %48, %4, %cst_43 {dimension_numbers = #tpu.dot_dimension_numbers<[1], [0], [0], [1], [0, 0, 1, 1], [], []>} : vector<4x4xf32>, vector<4x128xf32>, vector<4x128xf32> -> vector<4x128xf32>
    %50 = arith.addf %47, %49 : vector<4x128xf32>
    %51 = vector.extract_strided_slice %0 {offsets = [0, 15], sizes = [4, 4], strides = [1, 1]} : vector<4x42xf32> to vector<4x4xf32>
    %cst_44 = arith.constant dense<0.000000e+00> : vector<4x128xf32>
    %52 = tpu.matmul %51, %5, %cst_44 {dimension_numbers = #tpu.dot_dimension_numbers<[1], [0], [0], [1], [0, 0, 1, 1], [], []>} : vector<4x4xf32>, vector<4x128xf32>, vector<4x128xf32> -> vector<4x128xf32>
    %53 = arith.addf %50, %52 : vector<4x128xf32>
    %54 = vector.extract_strided_slice %0 {offsets = [0, 22], sizes = [4, 4], strides = [1, 1]} : vector<4x42xf32> to vector<4x4xf32>
    %cst_45 = arith.constant dense<0.000000e+00> : vector<4x128xf32>
    %55 = tpu.matmul %54, %6, %cst_45 {dimension_numbers = #tpu.dot_dimension_numbers<[1], [0], [0], [1], [0, 0, 1, 1], [], []>} : vector<4x4xf32>, vector<4x128xf32>, vector<4x128xf32> -> vector<4x128xf32>
    %56 = arith.addf %53, %55 : vector<4x128xf32>
    %57 = vector.broadcast %1 : vector<1x128xf32> to vector<4x128xf32>
    %58 = arith.addf %56, %57 : vector<4x128xf32>
    %cst_46 = arith.constant 0.000000e+00 : f32
    %59 = vector.broadcast %cst_46 : f32 to vector<4x128xf32>
    %60 = arith.maximumf %58, %59 : vector<4x128xf32>
    %cst_47 = arith.constant 0.000000e+00 : f32
    %61 = vector.broadcast %cst_47 : f32 to vector<4x128xf32>
    %62 = vector.extract_strided_slice %0 {offsets = [0, 2], sizes = [4, 4], strides = [1, 1]} : vector<4x42xf32> to vector<4x4xf32>
    %cst_48 = arith.constant dense<0.000000e+00> : vector<4x128xf32>
    %63 = tpu.matmul %62, %3, %cst_48 {dimension_numbers = #tpu.dot_dimension_numbers<[1], [0], [0], [1], [0, 0, 1, 1], [], []>} : vector<4x4xf32>, vector<4x128xf32>, vector<4x128xf32> -> vector<4x128xf32>
    %64 = arith.addf %61, %63 : vector<4x128xf32>
    %65 = vector.extract_strided_slice %0 {offsets = [0, 9], sizes = [4, 4], strides = [1, 1]} : vector<4x42xf32> to vector<4x4xf32>
    %cst_49 = arith.constant dense<0.000000e+00> : vector<4x128xf32>
    %66 = tpu.matmul %65, %4, %cst_49 {dimension_numbers = #tpu.dot_dimension_numbers<[1], [0], [0], [1], [0, 0, 1, 1], [], []>} : vector<4x4xf32>, vector<4x128xf32>, vector<4x128xf32> -> vector<4x128xf32>
    %67 = arith.addf %64, %66 : vector<4x128xf32>
    %68 = vector.extract_strided_slice %0 {offsets = [0, 16], sizes = [4, 4], strides = [1, 1]} : vector<4x42xf32> to vector<4x4xf32>
    %cst_50 = arith.constant dense<0.000000e+00> : vector<4x128xf32>
    %69 = tpu.matmul %68, %5, %cst_50 {dimension_numbers = #tpu.dot_dimension_numbers<[1], [0], [0], [1], [0, 0, 1, 1], [], []>} : vector<4x4xf32>, vector<4x128xf32>, vector<4x128xf32> -> vector<4x128xf32>
    %70 = arith.addf %67, %69 : vector<4x128xf32>
    %71 = vector.extract_strided_slice %0 {offsets = [0, 23], sizes = [4, 4], strides = [1, 1]} : vector<4x42xf32> to vector<4x4xf32>
    %cst_51 = arith.constant dense<0.000000e+00> : vector<4x128xf32>
    %72 = tpu.matmul %71, %6, %cst_51 {dimension_numbers = #tpu.dot_dimension_numbers<[1], [0], [0], [1], [0, 0, 1, 1], [], []>} : vector<4x4xf32>, vector<4x128xf32>, vector<4x128xf32> -> vector<4x128xf32>
    %73 = arith.addf %70, %72 : vector<4x128xf32>
    %74 = vector.broadcast %1 : vector<1x128xf32> to vector<4x128xf32>
    %75 = arith.addf %73, %74 : vector<4x128xf32>
    %cst_52 = arith.constant 0.000000e+00 : f32
    %76 = vector.broadcast %cst_52 : f32 to vector<4x128xf32>
    %77 = arith.maximumf %75, %76 : vector<4x128xf32>
    %cst_53 = arith.constant 0.000000e+00 : f32
    %78 = vector.broadcast %cst_53 : f32 to vector<4x128xf32>
    %79 = vector.extract_strided_slice %0 {offsets = [0, 3], sizes = [4, 4], strides = [1, 1]} : vector<4x42xf32> to vector<4x4xf32>
    %cst_54 = arith.constant dense<0.000000e+00> : vector<4x128xf32>
    %80 = tpu.matmul %79, %3, %cst_54 {dimension_numbers = #tpu.dot_dimension_numbers<[1], [0], [0], [1], [0, 0, 1, 1], [], []>} : vector<4x4xf32>, vector<4x128xf32>, vector<4x128xf32> -> vector<4x128xf32>
    %81 = arith.addf %78, %80 : vector<4x128xf32>
    %82 = vector.extract_strided_slice %0 {offsets = [0, 10], sizes = [4, 4], strides = [1, 1]} : vector<4x42xf32> to vector<4x4xf32>
    %cst_55 = arith.constant dense<0.000000e+00> : vector<4x128xf32>
    %83 = tpu.matmul %82, %4, %cst_55 {dimension_numbers = #tpu.dot_dimension_numbers<[1], [0], [0], [1], [0, 0, 1, 1], [], []>} : vector<4x4xf32>, vector<4x128xf32>, vector<4x128xf32> -> vector<4x128xf32>
    %84 = arith.addf %81, %83 : vector<4x128xf32>
    %85 = vector.extract_strided_slice %0 {offsets = [0, 17], sizes = [4, 4], strides = [1, 1]} : vector<4x42xf32> to vector<4x4xf32>
    %cst_56 = arith.constant dense<0.000000e+00> : vector<4x128xf32>
    %86 = tpu.matmul %85, %5, %cst_56 {dimension_numbers = #tpu.dot_dimension_numbers<[1], [0], [0], [1], [0, 0, 1, 1], [], []>} : vector<4x4xf32>, vector<4x128xf32>, vector<4x128xf32> -> vector<4x128xf32>
    %87 = arith.addf %84, %86 : vector<4x128xf32>
    %88 = vector.extract_strided_slice %0 {offsets = [0, 24], sizes = [4, 4], strides = [1, 1]} : vector<4x42xf32> to vector<4x4xf32>
    %cst_57 = arith.constant dense<0.000000e+00> : vector<4x128xf32>
    %89 = tpu.matmul %88, %6, %cst_57 {dimension_numbers = #tpu.dot_dimension_numbers<[1], [0], [0], [1], [0, 0, 1, 1], [], []>} : vector<4x4xf32>, vector<4x128xf32>, vector<4x128xf32> -> vector<4x128xf32>
    %90 = arith.addf %87, %89 : vector<4x128xf32>
    %91 = vector.broadcast %1 : vector<1x128xf32> to vector<4x128xf32>
    %92 = arith.addf %90, %91 : vector<4x128xf32>
    %cst_58 = arith.constant 0.000000e+00 : f32
    %93 = vector.broadcast %cst_58 : f32 to vector<4x128xf32>
    %94 = arith.maximumf %92, %93 : vector<4x128xf32>
    %cst_59 = arith.constant 0.000000e+00 : f32
    %95 = vector.broadcast %cst_59 : f32 to vector<4x128xf32>
    %96 = vector.extract_strided_slice %0 {offsets = [0, 7], sizes = [4, 4], strides = [1, 1]} : vector<4x42xf32> to vector<4x4xf32>
    %cst_60 = arith.constant dense<0.000000e+00> : vector<4x128xf32>
    %97 = tpu.matmul %96, %3, %cst_60 {dimension_numbers = #tpu.dot_dimension_numbers<[1], [0], [0], [1], [0, 0, 1, 1], [], []>} : vector<4x4xf32>, vector<4x128xf32>, vector<4x128xf32> -> vector<4x128xf32>
    %98 = arith.addf %95, %97 : vector<4x128xf32>
    %99 = vector.extract_strided_slice %0 {offsets = [0, 14], sizes = [4, 4], strides = [1, 1]} : vector<4x42xf32> to vector<4x4xf32>
    %cst_61 = arith.constant dense<0.000000e+00> : vector<4x128xf32>
    %100 = tpu.matmul %99, %4, %cst_61 {dimension_numbers = #tpu.dot_dimension_numbers<[1], [0], [0], [1], [0, 0, 1, 1], [], []>} : vector<4x4xf32>, vector<4x128xf32>, vector<4x128xf32> -> vector<4x128xf32>
    %101 = arith.addf %98, %100 : vector<4x128xf32>
    %102 = vector.extract_strided_slice %0 {offsets = [0, 21], sizes = [4, 4], strides = [1, 1]} : vector<4x42xf32> to vector<4x4xf32>
    %cst_62 = arith.constant dense<0.000000e+00> : vector<4x128xf32>
    %103 = tpu.matmul %102, %5, %cst_62 {dimension_numbers = #tpu.dot_dimension_numbers<[1], [0], [0], [1], [0, 0, 1, 1], [], []>} : vector<4x4xf32>, vector<4x128xf32>, vector<4x128xf32> -> vector<4x128xf32>
    %104 = arith.addf %101, %103 : vector<4x128xf32>
    %105 = vector.extract_strided_slice %0 {offsets = [0, 28], sizes = [4, 4], strides = [1, 1]} : vector<4x42xf32> to vector<4x4xf32>
    %cst_63 = arith.constant dense<0.000000e+00> : vector<4x128xf32>
    %106 = tpu.matmul %105, %6, %cst_63 {dimension_numbers = #tpu.dot_dimension_numbers<[1], [0], [0], [1], [0, 0, 1, 1], [], []>} : vector<4x4xf32>, vector<4x128xf32>, vector<4x128xf32> -> vector<4x128xf32>
    %107 = arith.addf %104, %106 : vector<4x128xf32>
    %108 = vector.broadcast %1 : vector<1x128xf32> to vector<4x128xf32>
    %109 = arith.addf %107, %108 : vector<4x128xf32>
    %cst_64 = arith.constant 0.000000e+00 : f32
    %110 = vector.broadcast %cst_64 : f32 to vector<4x128xf32>
    %111 = arith.maximumf %109, %110 : vector<4x128xf32>
    %cst_65 = arith.constant 0.000000e+00 : f32
    %112 = vector.broadcast %cst_65 : f32 to vector<4x128xf32>
    %113 = vector.extract_strided_slice %0 {offsets = [0, 8], sizes = [4, 4], strides = [1, 1]} : vector<4x42xf32> to vector<4x4xf32>
    %cst_66 = arith.constant dense<0.000000e+00> : vector<4x128xf32>
    %114 = tpu.matmul %113, %3, %cst_66 {dimension_numbers = #tpu.dot_dimension_numbers<[1], [0], [0], [1], [0, 0, 1, 1], [], []>} : vector<4x4xf32>, vector<4x128xf32>, vector<4x128xf32> -> vector<4x128xf32>
    %115 = arith.addf %112, %114 : vector<4x128xf32>
    %116 = vector.extract_strided_slice %0 {offsets = [0, 15], sizes = [4, 4], strides = [1, 1]} : vector<4x42xf32> to vector<4x4xf32>
    %cst_67 = arith.constant dense<0.000000e+00> : vector<4x128xf32>
    %117 = tpu.matmul %116, %4, %cst_67 {dimension_numbers = #tpu.dot_dimension_numbers<[1], [0], [0], [1], [0, 0, 1, 1], [], []>} : vector<4x4xf32>, vector<4x128xf32>, vector<4x128xf32> -> vector<4x128xf32>
    %118 = arith.addf %115, %117 : vector<4x128xf32>
    %119 = vector.extract_strided_slice %0 {offsets = [0, 22], sizes = [4, 4], strides = [1, 1]} : vector<4x42xf32> to vector<4x4xf32>
    %cst_68 = arith.constant dense<0.000000e+00> : vector<4x128xf32>
    %120 = tpu.matmul %119, %5, %cst_68 {dimension_numbers = #tpu.dot_dimension_numbers<[1], [0], [0], [1], [0, 0, 1, 1], [], []>} : vector<4x4xf32>, vector<4x128xf32>, vector<4x128xf32> -> vector<4x128xf32>
    %121 = arith.addf %118, %120 : vector<4x128xf32>
    %122 = vector.extract_strided_slice %0 {offsets = [0, 29], sizes = [4, 4], strides = [1, 1]} : vector<4x42xf32> to vector<4x4xf32>
    %cst_69 = arith.constant dense<0.000000e+00> : vector<4x128xf32>
    %123 = tpu.matmul %122, %6, %cst_69 {dimension_numbers = #tpu.dot_dimension_numbers<[1], [0], [0], [1], [0, 0, 1, 1], [], []>} : vector<4x4xf32>, vector<4x128xf32>, vector<4x128xf32> -> vector<4x128xf32>
    %124 = arith.addf %121, %123 : vector<4x128xf32>
    %125 = vector.broadcast %1 : vector<1x128xf32> to vector<4x128xf32>
    %126 = arith.addf %124, %125 : vector<4x128xf32>
    %cst_70 = arith.constant 0.000000e+00 : f32
    %127 = vector.broadcast %cst_70 : f32 to vector<4x128xf32>
    %128 = arith.maximumf %126, %127 : vector<4x128xf32>
    %cst_71 = arith.constant 0.000000e+00 : f32
    %129 = vector.broadcast %cst_71 : f32 to vector<4x128xf32>
    %130 = vector.extract_strided_slice %0 {offsets = [0, 9], sizes = [4, 4], strides = [1, 1]} : vector<4x42xf32> to vector<4x4xf32>
    %cst_72 = arith.constant dense<0.000000e+00> : vector<4x128xf32>
    %131 = tpu.matmul %130, %3, %cst_72 {dimension_numbers = #tpu.dot_dimension_numbers<[1], [0], [0], [1], [0, 0, 1, 1], [], []>} : vector<4x4xf32>, vector<4x128xf32>, vector<4x128xf32> -> vector<4x128xf32>
    %132 = arith.addf %129, %131 : vector<4x128xf32>
    %133 = vector.extract_strided_slice %0 {offsets = [0, 16], sizes = [4, 4], strides = [1, 1]} : vector<4x42xf32> to vector<4x4xf32>
    %cst_73 = arith.constant dense<0.000000e+00> : vector<4x128xf32>
    %134 = tpu.matmul %133, %4, %cst_73 {dimension_numbers = #tpu.dot_dimension_numbers<[1], [0], [0], [1], [0, 0, 1, 1], [], []>} : vector<4x4xf32>, vector<4x128xf32>, vector<4x128xf32> -> vector<4x128xf32>
    %135 = arith.addf %132, %134 : vector<4x128xf32>
    %136 = vector.extract_strided_slice %0 {offsets = [0, 23], sizes = [4, 4], strides = [1, 1]} : vector<4x42xf32> to vector<4x4xf32>
    %cst_74 = arith.constant dense<0.000000e+00> : vector<4x128xf32>
    %137 = tpu.matmul %136, %5, %cst_74 {dimension_numbers = #tpu.dot_dimension_numbers<[1], [0], [0], [1], [0, 0, 1, 1], [], []>} : vector<4x4xf32>, vector<4x128xf32>, vector<4x128xf32> -> vector<4x128xf32>
    %138 = arith.addf %135, %137 : vector<4x128xf32>
    %139 = vector.extract_strided_slice %0 {offsets = [0, 30], sizes = [4, 4], strides = [1, 1]} : vector<4x42xf32> to vector<4x4xf32>
    %cst_75 = arith.constant dense<0.000000e+00> : vector<4x128xf32>
    %140 = tpu.matmul %139, %6, %cst_75 {dimension_numbers = #tpu.dot_dimension_numbers<[1], [0], [0], [1], [0, 0, 1, 1], [], []>} : vector<4x4xf32>, vector<4x128xf32>, vector<4x128xf32> -> vector<4x128xf32>
    %141 = arith.addf %138, %140 : vector<4x128xf32>
    %142 = vector.broadcast %1 : vector<1x128xf32> to vector<4x128xf32>
    %143 = arith.addf %141, %142 : vector<4x128xf32>
    %cst_76 = arith.constant 0.000000e+00 : f32
    %144 = vector.broadcast %cst_76 : f32 to vector<4x128xf32>
    %145 = arith.maximumf %143, %144 : vector<4x128xf32>
    %cst_77 = arith.constant 0.000000e+00 : f32
    %146 = vector.broadcast %cst_77 : f32 to vector<4x128xf32>
    %147 = vector.extract_strided_slice %0 {offsets = [0, 10], sizes = [4, 4], strides = [1, 1]} : vector<4x42xf32> to vector<4x4xf32>
    %cst_78 = arith.constant dense<0.000000e+00> : vector<4x128xf32>
    %148 = tpu.matmul %147, %3, %cst_78 {dimension_numbers = #tpu.dot_dimension_numbers<[1], [0], [0], [1], [0, 0, 1, 1], [], []>} : vector<4x4xf32>, vector<4x128xf32>, vector<4x128xf32> -> vector<4x128xf32>
    %149 = arith.addf %146, %148 : vector<4x128xf32>
    %150 = vector.extract_strided_slice %0 {offsets = [0, 17], sizes = [4, 4], strides = [1, 1]} : vector<4x42xf32> to vector<4x4xf32>
    %cst_79 = arith.constant dense<0.000000e+00> : vector<4x128xf32>
    %151 = tpu.matmul %150, %4, %cst_79 {dimension_numbers = #tpu.dot_dimension_numbers<[1], [0], [0], [1], [0, 0, 1, 1], [], []>} : vector<4x4xf32>, vector<4x128xf32>, vector<4x128xf32> -> vector<4x128xf32>
    %152 = arith.addf %149, %151 : vector<4x128xf32>
    %153 = vector.extract_strided_slice %0 {offsets = [0, 24], sizes = [4, 4], strides = [1, 1]} : vector<4x42xf32> to vector<4x4xf32>
    %cst_80 = arith.constant dense<0.000000e+00> : vector<4x128xf32>
    %154 = tpu.matmul %153, %5, %cst_80 {dimension_numbers = #tpu.dot_dimension_numbers<[1], [0], [0], [1], [0, 0, 1, 1], [], []>} : vector<4x4xf32>, vector<4x128xf32>, vector<4x128xf32> -> vector<4x128xf32>
    %155 = arith.addf %152, %154 : vector<4x128xf32>
    %156 = vector.extract_strided_slice %0 {offsets = [0, 31], sizes = [4, 4], strides = [1, 1]} : vector<4x42xf32> to vector<4x4xf32>
    %cst_81 = arith.constant dense<0.000000e+00> : vector<4x128xf32>
    %157 = tpu.matmul %156, %6, %cst_81 {dimension_numbers = #tpu.dot_dimension_numbers<[1], [0], [0], [1], [0, 0, 1, 1], [], []>} : vector<4x4xf32>, vector<4x128xf32>, vector<4x128xf32> -> vector<4x128xf32>
    %158 = arith.addf %155, %157 : vector<4x128xf32>
    %159 = vector.broadcast %1 : vector<1x128xf32> to vector<4x128xf32>
    %160 = arith.addf %158, %159 : vector<4x128xf32>
    %cst_82 = arith.constant 0.000000e+00 : f32
    %161 = vector.broadcast %cst_82 : f32 to vector<4x128xf32>
    %162 = arith.maximumf %160, %161 : vector<4x128xf32>
    %cst_83 = arith.constant 0.000000e+00 : f32
    %163 = vector.broadcast %cst_83 : f32 to vector<4x128xf32>
    %164 = vector.extract_strided_slice %0 {offsets = [0, 14], sizes = [4, 4], strides = [1, 1]} : vector<4x42xf32> to vector<4x4xf32>
    %cst_84 = arith.constant dense<0.000000e+00> : vector<4x128xf32>
    %165 = tpu.matmul %164, %3, %cst_84 {dimension_numbers = #tpu.dot_dimension_numbers<[1], [0], [0], [1], [0, 0, 1, 1], [], []>} : vector<4x4xf32>, vector<4x128xf32>, vector<4x128xf32> -> vector<4x128xf32>
    %166 = arith.addf %163, %165 : vector<4x128xf32>
    %167 = vector.extract_strided_slice %0 {offsets = [0, 21], sizes = [4, 4], strides = [1, 1]} : vector<4x42xf32> to vector<4x4xf32>
    %cst_85 = arith.constant dense<0.000000e+00> : vector<4x128xf32>
    %168 = tpu.matmul %167, %4, %cst_85 {dimension_numbers = #tpu.dot_dimension_numbers<[1], [0], [0], [1], [0, 0, 1, 1], [], []>} : vector<4x4xf32>, vector<4x128xf32>, vector<4x128xf32> -> vector<4x128xf32>
    %169 = arith.addf %166, %168 : vector<4x128xf32>
    %170 = vector.extract_strided_slice %0 {offsets = [0, 28], sizes = [4, 4], strides = [1, 1]} : vector<4x42xf32> to vector<4x4xf32>
    %cst_86 = arith.constant dense<0.000000e+00> : vector<4x128xf32>
    %171 = tpu.matmul %170, %5, %cst_86 {dimension_numbers = #tpu.dot_dimension_numbers<[1], [0], [0], [1], [0, 0, 1, 1], [], []>} : vector<4x4xf32>, vector<4x128xf32>, vector<4x128xf32> -> vector<4x128xf32>
    %172 = arith.addf %169, %171 : vector<4x128xf32>
    %173 = vector.extract_strided_slice %0 {offsets = [0, 35], sizes = [4, 4], strides = [1, 1]} : vector<4x42xf32> to vector<4x4xf32>
    %cst_87 = arith.constant dense<0.000000e+00> : vector<4x128xf32>
    %174 = tpu.matmul %173, %6, %cst_87 {dimension_numbers = #tpu.dot_dimension_numbers<[1], [0], [0], [1], [0, 0, 1, 1], [], []>} : vector<4x4xf32>, vector<4x128xf32>, vector<4x128xf32> -> vector<4x128xf32>
    %175 = arith.addf %172, %174 : vector<4x128xf32>
    %176 = vector.broadcast %1 : vector<1x128xf32> to vector<4x128xf32>
    %177 = arith.addf %175, %176 : vector<4x128xf32>
    %cst_88 = arith.constant 0.000000e+00 : f32
    %178 = vector.broadcast %cst_88 : f32 to vector<4x128xf32>
    %179 = arith.maximumf %177, %178 : vector<4x128xf32>
    %cst_89 = arith.constant 0.000000e+00 : f32
    %180 = vector.broadcast %cst_89 : f32 to vector<4x128xf32>
    %181 = vector.extract_strided_slice %0 {offsets = [0, 15], sizes = [4, 4], strides = [1, 1]} : vector<4x42xf32> to vector<4x4xf32>
    %cst_90 = arith.constant dense<0.000000e+00> : vector<4x128xf32>
    %182 = tpu.matmul %181, %3, %cst_90 {dimension_numbers = #tpu.dot_dimension_numbers<[1], [0], [0], [1], [0, 0, 1, 1], [], []>} : vector<4x4xf32>, vector<4x128xf32>, vector<4x128xf32> -> vector<4x128xf32>
    %183 = arith.addf %180, %182 : vector<4x128xf32>
    %184 = vector.extract_strided_slice %0 {offsets = [0, 22], sizes = [4, 4], strides = [1, 1]} : vector<4x42xf32> to vector<4x4xf32>
    %cst_91 = arith.constant dense<0.000000e+00> : vector<4x128xf32>
    %185 = tpu.matmul %184, %4, %cst_91 {dimension_numbers = #tpu.dot_dimension_numbers<[1], [0], [0], [1], [0, 0, 1, 1], [], []>} : vector<4x4xf32>, vector<4x128xf32>, vector<4x128xf32> -> vector<4x128xf32>
    %186 = arith.addf %183, %185 : vector<4x128xf32>
    %187 = vector.extract_strided_slice %0 {offsets = [0, 29], sizes = [4, 4], strides = [1, 1]} : vector<4x42xf32> to vector<4x4xf32>
    %cst_92 = arith.constant dense<0.000000e+00> : vector<4x128xf32>
    %188 = tpu.matmul %187, %5, %cst_92 {dimension_numbers = #tpu.dot_dimension_numbers<[1], [0], [0], [1], [0, 0, 1, 1], [], []>} : vector<4x4xf32>, vector<4x128xf32>, vector<4x128xf32> -> vector<4x128xf32>
    %189 = arith.addf %186, %188 : vector<4x128xf32>
    %190 = vector.extract_strided_slice %0 {offsets = [0, 36], sizes = [4, 4], strides = [1, 1]} : vector<4x42xf32> to vector<4x4xf32>
    %cst_93 = arith.constant dense<0.000000e+00> : vector<4x128xf32>
    %191 = tpu.matmul %190, %6, %cst_93 {dimension_numbers = #tpu.dot_dimension_numbers<[1], [0], [0], [1], [0, 0, 1, 1], [], []>} : vector<4x4xf32>, vector<4x128xf32>, vector<4x128xf32> -> vector<4x128xf32>
    %192 = arith.addf %189, %191 : vector<4x128xf32>
    %193 = vector.broadcast %1 : vector<1x128xf32> to vector<4x128xf32>
    %194 = arith.addf %192, %193 : vector<4x128xf32>
    %cst_94 = arith.constant 0.000000e+00 : f32
    %195 = vector.broadcast %cst_94 : f32 to vector<4x128xf32>
    %196 = arith.maximumf %194, %195 : vector<4x128xf32>
    %cst_95 = arith.constant 0.000000e+00 : f32
    %197 = vector.broadcast %cst_95 : f32 to vector<4x128xf32>
    %198 = vector.extract_strided_slice %0 {offsets = [0, 16], sizes = [4, 4], strides = [1, 1]} : vector<4x42xf32> to vector<4x4xf32>
    %cst_96 = arith.constant dense<0.000000e+00> : vector<4x128xf32>
    %199 = tpu.matmul %198, %3, %cst_96 {dimension_numbers = #tpu.dot_dimension_numbers<[1], [0], [0], [1], [0, 0, 1, 1], [], []>} : vector<4x4xf32>, vector<4x128xf32>, vector<4x128xf32> -> vector<4x128xf32>
    %200 = arith.addf %197, %199 : vector<4x128xf32>
    %201 = vector.extract_strided_slice %0 {offsets = [0, 23], sizes = [4, 4], strides = [1, 1]} : vector<4x42xf32> to vector<4x4xf32>
    %cst_97 = arith.constant dense<0.000000e+00> : vector<4x128xf32>
    %202 = tpu.matmul %201, %4, %cst_97 {dimension_numbers = #tpu.dot_dimension_numbers<[1], [0], [0], [1], [0, 0, 1, 1], [], []>} : vector<4x4xf32>, vector<4x128xf32>, vector<4x128xf32> -> vector<4x128xf32>
    %203 = arith.addf %200, %202 : vector<4x128xf32>
    %204 = vector.extract_strided_slice %0 {offsets = [0, 30], sizes = [4, 4], strides = [1, 1]} : vector<4x42xf32> to vector<4x4xf32>
    %cst_98 = arith.constant dense<0.000000e+00> : vector<4x128xf32>
    %205 = tpu.matmul %204, %5, %cst_98 {dimension_numbers = #tpu.dot_dimension_numbers<[1], [0], [0], [1], [0, 0, 1, 1], [], []>} : vector<4x4xf32>, vector<4x128xf32>, vector<4x128xf32> -> vector<4x128xf32>
    %206 = arith.addf %203, %205 : vector<4x128xf32>
    %207 = vector.extract_strided_slice %0 {offsets = [0, 37], sizes = [4, 4], strides = [1, 1]} : vector<4x42xf32> to vector<4x4xf32>
    %cst_99 = arith.constant dense<0.000000e+00> : vector<4x128xf32>
    %208 = tpu.matmul %207, %6, %cst_99 {dimension_numbers = #tpu.dot_dimension_numbers<[1], [0], [0], [1], [0, 0, 1, 1], [], []>} : vector<4x4xf32>, vector<4x128xf32>, vector<4x128xf32> -> vector<4x128xf32>
    %209 = arith.addf %206, %208 : vector<4x128xf32>
    %210 = vector.broadcast %1 : vector<1x128xf32> to vector<4x128xf32>
    %211 = arith.addf %209, %210 : vector<4x128xf32>
    %cst_100 = arith.constant 0.000000e+00 : f32
    %212 = vector.broadcast %cst_100 : f32 to vector<4x128xf32>
    %213 = arith.maximumf %211, %212 : vector<4x128xf32>
    %cst_101 = arith.constant 0.000000e+00 : f32
    %214 = vector.broadcast %cst_101 : f32 to vector<4x128xf32>
    %215 = vector.extract_strided_slice %0 {offsets = [0, 17], sizes = [4, 4], strides = [1, 1]} : vector<4x42xf32> to vector<4x4xf32>
    %cst_102 = arith.constant dense<0.000000e+00> : vector<4x128xf32>
    %216 = tpu.matmul %215, %3, %cst_102 {dimension_numbers = #tpu.dot_dimension_numbers<[1], [0], [0], [1], [0, 0, 1, 1], [], []>} : vector<4x4xf32>, vector<4x128xf32>, vector<4x128xf32> -> vector<4x128xf32>
    %217 = arith.addf %214, %216 : vector<4x128xf32>
    %218 = vector.extract_strided_slice %0 {offsets = [0, 24], sizes = [4, 4], strides = [1, 1]} : vector<4x42xf32> to vector<4x4xf32>
    %cst_103 = arith.constant dense<0.000000e+00> : vector<4x128xf32>
    %219 = tpu.matmul %218, %4, %cst_103 {dimension_numbers = #tpu.dot_dimension_numbers<[1], [0], [0], [1], [0, 0, 1, 1], [], []>} : vector<4x4xf32>, vector<4x128xf32>, vector<4x128xf32> -> vector<4x128xf32>
    %220 = arith.addf %217, %219 : vector<4x128xf32>
    %221 = vector.extract_strided_slice %0 {offsets = [0, 31], sizes = [4, 4], strides = [1, 1]} : vector<4x42xf32> to vector<4x4xf32>
    %cst_104 = arith.constant dense<0.000000e+00> : vector<4x128xf32>
    %222 = tpu.matmul %221, %5, %cst_104 {dimension_numbers = #tpu.dot_dimension_numbers<[1], [0], [0], [1], [0, 0, 1, 1], [], []>} : vector<4x4xf32>, vector<4x128xf32>, vector<4x128xf32> -> vector<4x128xf32>
    %223 = arith.addf %220, %222 : vector<4x128xf32>
    %224 = vector.extract_strided_slice %0 {offsets = [0, 38], sizes = [4, 4], strides = [1, 1]} : vector<4x42xf32> to vector<4x4xf32>
    %cst_105 = arith.constant dense<0.000000e+00> : vector<4x128xf32>
    %225 = tpu.matmul %224, %6, %cst_105 {dimension_numbers = #tpu.dot_dimension_numbers<[1], [0], [0], [1], [0, 0, 1, 1], [], []>} : vector<4x4xf32>, vector<4x128xf32>, vector<4x128xf32> -> vector<4x128xf32>
    %226 = arith.addf %223, %225 : vector<4x128xf32>
    %227 = vector.broadcast %1 : vector<1x128xf32> to vector<4x128xf32>
    %228 = arith.addf %226, %227 : vector<4x128xf32>
    %cst_106 = arith.constant 0.000000e+00 : f32
    %229 = vector.broadcast %cst_106 : f32 to vector<4x128xf32>
    %230 = arith.maximumf %228, %229 : vector<4x128xf32>
    %cst_107 = arith.constant 0.000000e+00 : f32
    %231 = vector.broadcast %cst_107 : f32 to vector<4x64xf32>
    %cst_108 = arith.constant 0.000000e+00 : f32
    %232 = vector.broadcast %cst_108 : f32 to vector<4x64xf32>
    %cst_109 = arith.constant dense<0.000000e+00> : vector<4x64xf32>
    %233 = tpu.matmul %43, %8, %cst_109 {dimension_numbers = #tpu.dot_dimension_numbers<[1], [0], [0], [1], [0, 0, 1, 1], [], []>} : vector<4x128xf32>, vector<128x64xf32>, vector<4x64xf32> -> vector<4x64xf32>
    %234 = arith.addf %232, %233 : vector<4x64xf32>
    %cst_110 = arith.constant dense<0.000000e+00> : vector<4x64xf32>
    %235 = tpu.matmul %60, %10, %cst_110 {dimension_numbers = #tpu.dot_dimension_numbers<[1], [0], [0], [1], [0, 0, 1, 1], [], []>} : vector<4x128xf32>, vector<128x64xf32>, vector<4x64xf32> -> vector<4x64xf32>
    %236 = arith.addf %234, %235 : vector<4x64xf32>
    %cst_111 = arith.constant dense<0.000000e+00> : vector<4x64xf32>
    %237 = tpu.matmul %111, %12, %cst_111 {dimension_numbers = #tpu.dot_dimension_numbers<[1], [0], [0], [1], [0, 0, 1, 1], [], []>} : vector<4x128xf32>, vector<128x64xf32>, vector<4x64xf32> -> vector<4x64xf32>
    %238 = arith.addf %236, %237 : vector<4x64xf32>
    %cst_112 = arith.constant dense<0.000000e+00> : vector<4x64xf32>
    %239 = tpu.matmul %128, %14, %cst_112 {dimension_numbers = #tpu.dot_dimension_numbers<[1], [0], [0], [1], [0, 0, 1, 1], [], []>} : vector<4x128xf32>, vector<128x64xf32>, vector<4x64xf32> -> vector<4x64xf32>
    %240 = arith.addf %238, %239 : vector<4x64xf32>
    %241 = vector.broadcast %2 : vector<1x64xf32> to vector<4x64xf32>
    %242 = arith.addf %240, %241 : vector<4x64xf32>
    %cst_113 = arith.constant 0.000000e+00 : f32
    %243 = vector.broadcast %cst_113 : f32 to vector<4x64xf32>
    %244 = arith.maximumf %242, %243 : vector<4x64xf32>
    %cst_114 = arith.constant dense<0.000000e+00> : vector<4x64xf32>
    %245 = tpu.matmul %244, %16, %cst_114 {dimension_numbers = #tpu.dot_dimension_numbers<[1], [0], [0], [1], [0, 0, 1, 1], [], []>} : vector<4x64xf32>, vector<64x64xf32>, vector<4x64xf32> -> vector<4x64xf32>
    %246 = arith.addf %231, %245 : vector<4x64xf32>
    %cst_115 = arith.constant 0.000000e+00 : f32
    %247 = vector.broadcast %cst_115 : f32 to vector<4x64xf32>
    %cst_116 = arith.constant dense<0.000000e+00> : vector<4x64xf32>
    %248 = tpu.matmul %60, %8, %cst_116 {dimension_numbers = #tpu.dot_dimension_numbers<[1], [0], [0], [1], [0, 0, 1, 1], [], []>} : vector<4x128xf32>, vector<128x64xf32>, vector<4x64xf32> -> vector<4x64xf32>
    %249 = arith.addf %247, %248 : vector<4x64xf32>
    %cst_117 = arith.constant dense<0.000000e+00> : vector<4x64xf32>
    %250 = tpu.matmul %77, %10, %cst_117 {dimension_numbers = #tpu.dot_dimension_numbers<[1], [0], [0], [1], [0, 0, 1, 1], [], []>} : vector<4x128xf32>, vector<128x64xf32>, vector<4x64xf32> -> vector<4x64xf32>
    %251 = arith.addf %249, %250 : vector<4x64xf32>
    %cst_118 = arith.constant dense<0.000000e+00> : vector<4x64xf32>
    %252 = tpu.matmul %128, %12, %cst_118 {dimension_numbers = #tpu.dot_dimension_numbers<[1], [0], [0], [1], [0, 0, 1, 1], [], []>} : vector<4x128xf32>, vector<128x64xf32>, vector<4x64xf32> -> vector<4x64xf32>
    %253 = arith.addf %251, %252 : vector<4x64xf32>
    %cst_119 = arith.constant dense<0.000000e+00> : vector<4x64xf32>
    %254 = tpu.matmul %145, %14, %cst_119 {dimension_numbers = #tpu.dot_dimension_numbers<[1], [0], [0], [1], [0, 0, 1, 1], [], []>} : vector<4x128xf32>, vector<128x64xf32>, vector<4x64xf32> -> vector<4x64xf32>
    %255 = arith.addf %253, %254 : vector<4x64xf32>
    %256 = vector.broadcast %2 : vector<1x64xf32> to vector<4x64xf32>
    %257 = arith.addf %255, %256 : vector<4x64xf32>
    %cst_120 = arith.constant 0.000000e+00 : f32
    %258 = vector.broadcast %cst_120 : f32 to vector<4x64xf32>
    %259 = arith.maximumf %257, %258 : vector<4x64xf32>
    %cst_121 = arith.constant dense<0.000000e+00> : vector<4x64xf32>
    %260 = tpu.matmul %259, %18, %cst_121 {dimension_numbers = #tpu.dot_dimension_numbers<[1], [0], [0], [1], [0, 0, 1, 1], [], []>} : vector<4x64xf32>, vector<64x64xf32>, vector<4x64xf32> -> vector<4x64xf32>
    %261 = arith.addf %246, %260 : vector<4x64xf32>
    %cst_122 = arith.constant 0.000000e+00 : f32
    %262 = vector.broadcast %cst_122 : f32 to vector<4x64xf32>
    %cst_123 = arith.constant dense<0.000000e+00> : vector<4x64xf32>
    %263 = tpu.matmul %77, %8, %cst_123 {dimension_numbers = #tpu.dot_dimension_numbers<[1], [0], [0], [1], [0, 0, 1, 1], [], []>} : vector<4x128xf32>, vector<128x64xf32>, vector<4x64xf32> -> vector<4x64xf32>
    %264 = arith.addf %262, %263 : vector<4x64xf32>
    %cst_124 = arith.constant dense<0.000000e+00> : vector<4x64xf32>
    %265 = tpu.matmul %94, %10, %cst_124 {dimension_numbers = #tpu.dot_dimension_numbers<[1], [0], [0], [1], [0, 0, 1, 1], [], []>} : vector<4x128xf32>, vector<128x64xf32>, vector<4x64xf32> -> vector<4x64xf32>
    %266 = arith.addf %264, %265 : vector<4x64xf32>
    %cst_125 = arith.constant dense<0.000000e+00> : vector<4x64xf32>
    %267 = tpu.matmul %145, %12, %cst_125 {dimension_numbers = #tpu.dot_dimension_numbers<[1], [0], [0], [1], [0, 0, 1, 1], [], []>} : vector<4x128xf32>, vector<128x64xf32>, vector<4x64xf32> -> vector<4x64xf32>
    %268 = arith.addf %266, %267 : vector<4x64xf32>
    %cst_126 = arith.constant dense<0.000000e+00> : vector<4x64xf32>
    %269 = tpu.matmul %162, %14, %cst_126 {dimension_numbers = #tpu.dot_dimension_numbers<[1], [0], [0], [1], [0, 0, 1, 1], [], []>} : vector<4x128xf32>, vector<128x64xf32>, vector<4x64xf32> -> vector<4x64xf32>
    %270 = arith.addf %268, %269 : vector<4x64xf32>
    %271 = vector.broadcast %2 : vector<1x64xf32> to vector<4x64xf32>
    %272 = arith.addf %270, %271 : vector<4x64xf32>
    %cst_127 = arith.constant 0.000000e+00 : f32
    %273 = vector.broadcast %cst_127 : f32 to vector<4x64xf32>
    %274 = arith.maximumf %272, %273 : vector<4x64xf32>
    %cst_128 = arith.constant dense<0.000000e+00> : vector<4x64xf32>
    %275 = tpu.matmul %274, %20, %cst_128 {dimension_numbers = #tpu.dot_dimension_numbers<[1], [0], [0], [1], [0, 0, 1, 1], [], []>} : vector<4x64xf32>, vector<64x64xf32>, vector<4x64xf32> -> vector<4x64xf32>
    %276 = arith.addf %261, %275 : vector<4x64xf32>
    %cst_129 = arith.constant 0.000000e+00 : f32
    %277 = vector.broadcast %cst_129 : f32 to vector<4x64xf32>
    %cst_130 = arith.constant dense<0.000000e+00> : vector<4x64xf32>
    %278 = tpu.matmul %111, %8, %cst_130 {dimension_numbers = #tpu.dot_dimension_numbers<[1], [0], [0], [1], [0, 0, 1, 1], [], []>} : vector<4x128xf32>, vector<128x64xf32>, vector<4x64xf32> -> vector<4x64xf32>
    %279 = arith.addf %277, %278 : vector<4x64xf32>
    %cst_131 = arith.constant dense<0.000000e+00> : vector<4x64xf32>
    %280 = tpu.matmul %128, %10, %cst_131 {dimension_numbers = #tpu.dot_dimension_numbers<[1], [0], [0], [1], [0, 0, 1, 1], [], []>} : vector<4x128xf32>, vector<128x64xf32>, vector<4x64xf32> -> vector<4x64xf32>
    %281 = arith.addf %279, %280 : vector<4x64xf32>
    %cst_132 = arith.constant dense<0.000000e+00> : vector<4x64xf32>
    %282 = tpu.matmul %179, %12, %cst_132 {dimension_numbers = #tpu.dot_dimension_numbers<[1], [0], [0], [1], [0, 0, 1, 1], [], []>} : vector<4x128xf32>, vector<128x64xf32>, vector<4x64xf32> -> vector<4x64xf32>
    %283 = arith.addf %281, %282 : vector<4x64xf32>
    %cst_133 = arith.constant dense<0.000000e+00> : vector<4x64xf32>
    %284 = tpu.matmul %196, %14, %cst_133 {dimension_numbers = #tpu.dot_dimension_numbers<[1], [0], [0], [1], [0, 0, 1, 1], [], []>} : vector<4x128xf32>, vector<128x64xf32>, vector<4x64xf32> -> vector<4x64xf32>
    %285 = arith.addf %283, %284 : vector<4x64xf32>
    %286 = vector.broadcast %2 : vector<1x64xf32> to vector<4x64xf32>
    %287 = arith.addf %285, %286 : vector<4x64xf32>
    %cst_134 = arith.constant 0.000000e+00 : f32
    %288 = vector.broadcast %cst_134 : f32 to vector<4x64xf32>
    %289 = arith.maximumf %287, %288 : vector<4x64xf32>
    %cst_135 = arith.constant dense<0.000000e+00> : vector<4x64xf32>
    %290 = tpu.matmul %289, %22, %cst_135 {dimension_numbers = #tpu.dot_dimension_numbers<[1], [0], [0], [1], [0, 0, 1, 1], [], []>} : vector<4x64xf32>, vector<64x64xf32>, vector<4x64xf32> -> vector<4x64xf32>
    %291 = arith.addf %276, %290 : vector<4x64xf32>
    %cst_136 = arith.constant 0.000000e+00 : f32
    %292 = vector.broadcast %cst_136 : f32 to vector<4x64xf32>
    %cst_137 = arith.constant dense<0.000000e+00> : vector<4x64xf32>
    %293 = tpu.matmul %128, %8, %cst_137 {dimension_numbers = #tpu.dot_dimension_numbers<[1], [0], [0], [1], [0, 0, 1, 1], [], []>} : vector<4x128xf32>, vector<128x64xf32>, vector<4x64xf32> -> vector<4x64xf32>
    %294 = arith.addf %292, %293 : vector<4x64xf32>
    %cst_138 = arith.constant dense<0.000000e+00> : vector<4x64xf32>
    %295 = tpu.matmul %145, %10, %cst_138 {dimension_numbers = #tpu.dot_dimension_numbers<[1], [0], [0], [1], [0, 0, 1, 1], [], []>} : vector<4x128xf32>, vector<128x64xf32>, vector<4x64xf32> -> vector<4x64xf32>
    %296 = arith.addf %294, %295 : vector<4x64xf32>
    %cst_139 = arith.constant dense<0.000000e+00> : vector<4x64xf32>
    %297 = tpu.matmul %196, %12, %cst_139 {dimension_numbers = #tpu.dot_dimension_numbers<[1], [0], [0], [1], [0, 0, 1, 1], [], []>} : vector<4x128xf32>, vector<128x64xf32>, vector<4x64xf32> -> vector<4x64xf32>
    %298 = arith.addf %296, %297 : vector<4x64xf32>
    %cst_140 = arith.constant dense<0.000000e+00> : vector<4x64xf32>
    %299 = tpu.matmul %213, %14, %cst_140 {dimension_numbers = #tpu.dot_dimension_numbers<[1], [0], [0], [1], [0, 0, 1, 1], [], []>} : vector<4x128xf32>, vector<128x64xf32>, vector<4x64xf32> -> vector<4x64xf32>
    %300 = arith.addf %298, %299 : vector<4x64xf32>
    %301 = vector.broadcast %2 : vector<1x64xf32> to vector<4x64xf32>
    %302 = arith.addf %300, %301 : vector<4x64xf32>
    %cst_141 = arith.constant 0.000000e+00 : f32
    %303 = vector.broadcast %cst_141 : f32 to vector<4x64xf32>
    %304 = arith.maximumf %302, %303 : vector<4x64xf32>
    %cst_142 = arith.constant dense<0.000000e+00> : vector<4x64xf32>
    %305 = tpu.matmul %304, %24, %cst_142 {dimension_numbers = #tpu.dot_dimension_numbers<[1], [0], [0], [1], [0, 0, 1, 1], [], []>} : vector<4x64xf32>, vector<64x64xf32>, vector<4x64xf32> -> vector<4x64xf32>
    %306 = arith.addf %291, %305 : vector<4x64xf32>
    %cst_143 = arith.constant 0.000000e+00 : f32
    %307 = vector.broadcast %cst_143 : f32 to vector<4x64xf32>
    %cst_144 = arith.constant dense<0.000000e+00> : vector<4x64xf32>
    %308 = tpu.matmul %145, %8, %cst_144 {dimension_numbers = #tpu.dot_dimension_numbers<[1], [0], [0], [1], [0, 0, 1, 1], [], []>} : vector<4x128xf32>, vector<128x64xf32>, vector<4x64xf32> -> vector<4x64xf32>
    %309 = arith.addf %307, %308 : vector<4x64xf32>
    %cst_145 = arith.constant dense<0.000000e+00> : vector<4x64xf32>
    %310 = tpu.matmul %162, %10, %cst_145 {dimension_numbers = #tpu.dot_dimension_numbers<[1], [0], [0], [1], [0, 0, 1, 1], [], []>} : vector<4x128xf32>, vector<128x64xf32>, vector<4x64xf32> -> vector<4x64xf32>
    %311 = arith.addf %309, %310 : vector<4x64xf32>
    %cst_146 = arith.constant dense<0.000000e+00> : vector<4x64xf32>
    %312 = tpu.matmul %213, %12, %cst_146 {dimension_numbers = #tpu.dot_dimension_numbers<[1], [0], [0], [1], [0, 0, 1, 1], [], []>} : vector<4x128xf32>, vector<128x64xf32>, vector<4x64xf32> -> vector<4x64xf32>
    %313 = arith.addf %311, %312 : vector<4x64xf32>
    %cst_147 = arith.constant dense<0.000000e+00> : vector<4x64xf32>
    %314 = tpu.matmul %230, %14, %cst_147 {dimension_numbers = #tpu.dot_dimension_numbers<[1], [0], [0], [1], [0, 0, 1, 1], [], []>} : vector<4x128xf32>, vector<128x64xf32>, vector<4x64xf32> -> vector<4x64xf32>
    %315 = arith.addf %313, %314 : vector<4x64xf32>
    %316 = vector.broadcast %2 : vector<1x64xf32> to vector<4x64xf32>
    %317 = arith.addf %315, %316 : vector<4x64xf32>
    %cst_148 = arith.constant 0.000000e+00 : f32
    %318 = vector.broadcast %cst_148 : f32 to vector<4x64xf32>
    %319 = arith.maximumf %317, %318 : vector<4x64xf32>
    %cst_149 = arith.constant dense<0.000000e+00> : vector<4x64xf32>
    %320 = tpu.matmul %319, %26, %cst_149 {dimension_numbers = #tpu.dot_dimension_numbers<[1], [0], [0], [1], [0, 0, 1, 1], [], []>} : vector<4x64xf32>, vector<64x64xf32>, vector<4x64xf32> -> vector<4x64xf32>
    %321 = arith.addf %306, %320 : vector<4x64xf32>
    %c0_150 = arith.constant 0 : index
    %c0_151 = arith.constant 0 : index
    %322 = vector.load %arg6[%c0_150, %c0_151] : memref<1x64xf32, #tpu.memory_space<vmem>>, vector<1x64xf32>
    %323 = vector.broadcast %322 : vector<1x64xf32> to vector<4x64xf32>
    %324 = arith.addf %321, %323 : vector<4x64xf32>
    %cst_152 = arith.constant 0.000000e+00 : f32
    %325 = vector.broadcast %cst_152 : f32 to vector<4x64xf32>
    %326 = arith.maximumf %324, %325 : vector<4x64xf32>
    %c0_153 = arith.constant 0 : index
    %c0_154 = arith.constant 0 : index
    %327 = vector.load %arg7[%c0_153, %c0_154] : memref<64x7xf32, #tpu.memory_space<vmem>>, vector<64x7xf32>
    %cst_155 = arith.constant dense<0.000000e+00> : vector<4x7xf32>
    %328 = tpu.matmul %326, %327, %cst_155 {dimension_numbers = #tpu.dot_dimension_numbers<[1], [0], [0], [1], [0, 0, 1, 1], [], []>} : vector<4x64xf32>, vector<64x7xf32>, vector<4x7xf32> -> vector<4x7xf32>
    %c0_156 = arith.constant 0 : index
    %c0_157 = arith.constant 0 : index
    %329 = vector.load %arg8[%c0_156, %c0_157] : memref<1x7xf32, #tpu.memory_space<vmem>>, vector<1x7xf32>
    %330 = vector.broadcast %329 : vector<1x7xf32> to vector<4x7xf32>
    %331 = arith.addf %328, %330 : vector<4x7xf32>
    %c0_158 = arith.constant 0 : index
    %c0_159 = arith.constant 0 : index
    %332 = vector.load %arg9[%c0_158, %c0_159] : memref<4x7xf32, #tpu.memory_space<vmem>>, vector<4x7xf32>
    tpu.vector_store %arg9[%c0_158, %c0_159], %331 {strides = array<i32>} : memref<4x7xf32, #tpu.memory_space<vmem>>, vector<4x7xf32>,
    return
  }
}

</mosaic_0001>

<llo_original>
// kernel: dqn_forward.1
$region0: #{dqn_forward.1}
  #allocation0 [shape = 'u32[]', space=smem, size = 0x4, offset = 0x4, fixed_abs, tag = 'smem constant byte address 0x4 - core index']
  #allocation1 [shape = 'u32[72,128]{1,0:T(1,128)}', space=vmem, size = 0x9000, scoped, tag = 'internal scratch']
  %s0 = inlined_call_operand.vmem [shape: f32[4,42], index: 0, kind: input, shape index: {}]
  %s1 = inlined_call_operand.vmem [shape: f32[16,128], index: 1, kind: input, shape index: {}]
  %s2 = inlined_call_operand.vmem [shape: f32[1,128], index: 2, kind: input, shape index: {}]
  %s3 = inlined_call_operand.vmem [shape: f32[4,128,64], index: 3, kind: input, shape index: {}]
  %s4 = inlined_call_operand.vmem [shape: f32[1,64], index: 4, kind: input, shape index: {}]
  %s5 = inlined_call_operand.vmem [shape: f32[6,64,64], index: 5, kind: input, shape index: {}]
  %s6 = inlined_call_operand.vmem [shape: f32[1,64], index: 6, kind: input, shape index: {}]
  %s7 = inlined_call_operand.vmem [shape: f32[64,7], index: 7, kind: input, shape index: {}]
  %s8 = inlined_call_operand.vmem [shape: f32[1,7], index: 8, kind: input, shape index: {}]
  %s9 = inlined_call_operand.hbm [shape: f32[4,7], index: 9, kind: output, shape index: {}]
  %s10 = sld [smem:[#allocation0]]
  $region46: #{dqn_forward.1} parent=0
    _
  %s12 = ssub.s32 1, %s10
  %s13 = scalar_select 0, %s12, %s10
  $region1: #{dqn_forward.1} parent=0
    #allocation2 [shape = 'u8[2048]{0}', space=vmem, size = 0x800, scoped, tag = 'output window, operand 0, single buffered']
    #allocation3 [shape = 's32[1]{0}', space=sflag, size = 0x4, scoped, tag = 'scoped memory for dqn_forward.1']
    %14 = vsyncpa [#allocation3], 0
    // Predicated region
    $region2: #{dqn_forward.1} parent=1 // pred_check
      _
    $region3: #{dqn_forward.1} parent=1 // pred_check_branch
      %16 = sbr.rel (0) target = $region5
    $region4: #{dqn_forward.1} parent=1 // pred_region
      _
    $region5: #{dqn_forward.1} parent=1 // pred_fallthru
      _
    // Predicated region
    $region6: #{dqn_forward.1} parent=1 // pred_check
      _
    $region7: #{dqn_forward.1} parent=1 // pred_check_branch
      %18 = sbr.rel (0) target = $region9
    $region8: #{dqn_forward.1} parent=1 // pred_region
      _
    $region9: #{dqn_forward.1} parent=1 // pred_fallthru
      _
    // Predicated region
    $region10: #{dqn_forward.1} parent=1 // pred_check
      _
    $region11: #{dqn_forward.1} parent=1 // pred_check_branch
      %20 = sbr.rel (0) target = $region13
    $region12: #{dqn_forward.1} parent=1 // pred_region
      _
    $region13: #{dqn_forward.1} parent=1 // pred_fallthru
      _
    // Predicated region
    $region14: #{dqn_forward.1} parent=1 // pred_check
      _
    $region15: #{dqn_forward.1} parent=1 // pred_check_branch
      %22 = sbr.rel (0) target = $region17
    $region16: #{dqn_forward.1} parent=1 // pred_region
      _
    $region17: #{dqn_forward.1} parent=1 // pred_fallthru
      _
    // Predicated region
    $region18: #{dqn_forward.1} parent=1 // pred_check
      _
    $region19: #{dqn_forward.1} parent=1 // pred_check_branch
      %24 = sbr.rel (0) target = $region21
    $region20: #{dqn_forward.1} parent=1 // pred_region
      _
    $region21: #{dqn_forward.1} parent=1 // pred_fallthru
      _
    // Predicated region
    $region22: #{dqn_forward.1} parent=1 // pred_check
      _
    $region23: #{dqn_forward.1} parent=1 // pred_check_branch
      %26 = sbr.rel (0) target = $region25
    $region24: #{dqn_forward.1} parent=1 // pred_region
      _
    $region25: #{dqn_forward.1} parent=1 // pred_fallthru
      _
    // Predicated region
    $region26: #{dqn_forward.1} parent=1 // pred_check
      _
    $region27: #{dqn_forward.1} parent=1 // pred_check_branch
      %28 = sbr.rel (0) target = $region29
    $region28: #{dqn_forward.1} parent=1 // pred_region
      _
    $region29: #{dqn_forward.1} parent=1 // pred_fallthru
      _
    // Predicated region
    $region30: #{dqn_forward.1} parent=1 // pred_check
      _
    $region31: #{dqn_forward.1} parent=1 // pred_check_branch
      %30 = sbr.rel (0) target = $region33
    $region32: #{dqn_forward.1} parent=1 // pred_region
      _
    $region33: #{dqn_forward.1} parent=1 // pred_fallthru
      _
    // Predicated region
    $region34: #{dqn_forward.1} parent=1 // pred_check
      _
    $region35: #{dqn_forward.1} parent=1 // pred_check_branch
      %32 = sbr.rel (0) target = $region37
    $region36: #{dqn_forward.1} parent=1 // pred_region
      _
    $region37: #{dqn_forward.1} parent=1 // pred_fallthru
      _
    %v33 = vld [vmem:[%s0] sm:$0xf]
    %v34 = vld [vmem:[%s2] sm:$0x1]
    %v35 = vld [vmem:[%s4] sm:$0x1]
    %v36 = vld [vmem:[%s1] sm:$0xf]
    %v37 = vld [vmem:[%s1 + $0x4] sm:$0xf]
    %v38 = vld [vmem:[%s1 + $0x8] sm:$0xf]
    %v39 = vld [vmem:[%s1 + $0xc] sm:$0xf]
    %v40 = vld [vmem:[%s3] sm:$0xff]
    %v41 = vld [vmem:[%s3 + $0x8] sm:$0xff]
    %v42 = vld [vmem:[%s3 + $0x10] sm:$0xff]
    %v43 = vld [vmem:[%s3 + $0x18] sm:$0xff]
    %v44 = vld [vmem:[%s3 + $0x20] sm:$0xff]
    %v45 = vld [vmem:[%s3 + $0x28] sm:$0xff]
    %v46 = vld [vmem:[%s3 + $0x30] sm:$0xff]
    %v47 = vld [vmem:[%s3 + $0x38] sm:$0xff]
    %v48 = vld [vmem:[%s3 + $0x40] sm:$0xff]
    %v49 = vld [vmem:[%s3 + $0x48] sm:$0xff]
    %v50 = vld [vmem:[%s3 + $0x50] sm:$0xff]
    %v51 = vld [vmem:[%s3 + $0x58] sm:$0xff]
    %v52 = vld [vmem:[%s3 + $0x60] sm:$0xff]
    %v53 = vld [vmem:[%s3 + $0x68] sm:$0xff]
    %v54 = vld [vmem:[%s3 + $0x70] sm:$0xff]
    %v55 = vld [vmem:[%s3 + $0x78] sm:$0xff]
    %s56 = scalar_lea.vmem %s3, 128
    %v57 = vld [vmem:[%s56] sm:$0xff]
    %v58 = vld [vmem:[%s56 + $0x8] sm:$0xff]
    %v59 = vld [vmem:[%s56 + $0x10] sm:$0xff]
    %v60 = vld [vmem:[%s56 + $0x18] sm:$0xff]
    %v61 = vld [vmem:[%s56 + $0x20] sm:$0xff]
    %v62 = vld [vmem:[%s56 + $0x28] sm:$0xff]
    %v63 = vld [vmem:[%s56 + $0x30] sm:$0xff]
    %v64 = vld [vmem:[%s56 + $0x38] sm:$0xff]
    %v65 = vld [vmem:[%s56 + $0x40] sm:$0xff]
    %v66 = vld [vmem:[%s56 + $0x48] sm:$0xff]
    %v67 = vld [vmem:[%s56 + $0x50] sm:$0xff]
    %v68 = vld [vmem:[%s56 + $0x58] sm:$0xff]
    %v69 = vld [vmem:[%s56 + $0x60] sm:$0xff]
    %v70 = vld [vmem:[%s56 + $0x68] sm:$0xff]
    %v71 = vld [vmem:[%s56 + $0x70] sm:$0xff]
    %v72 = vld [vmem:[%s56 + $0x78] sm:$0xff]
    %s73 = scalar_lea.vmem %s3, 256
    %v74 = vld [vmem:[%s73] sm:$0xff]
    %v75 = vld [vmem:[%s73 + $0x8] sm:$0xff]
    %v76 = vld [vmem:[%s73 + $0x10] sm:$0xff]
    %v77 = vld [vmem:[%s73 + $0x18] sm:$0xff]
    %v78 = vld [vmem:[%s73 + $0x20] sm:$0xff]
    %v79 = vld [vmem:[%s73 + $0x28] sm:$0xff]
    %v80 = vld [vmem:[%s73 + $0x30] sm:$0xff]
    %v81 = vld [vmem:[%s73 + $0x38] sm:$0xff]
    %v82 = vld [vmem:[%s73 + $0x40] sm:$0xff]
    %v83 = vld [vmem:[%s73 + $0x48] sm:$0xff]
    %v84 = vld [vmem:[%s73 + $0x50] sm:$0xff]
    %v85 = vld [vmem:[%s73 + $0x58] sm:$0xff]
    %v86 = vld [vmem:[%s73 + $0x60] sm:$0xff]
    %v87 = vld [vmem:[%s73 + $0x68] sm:$0xff]
    %v88 = vld [vmem:[%s73 + $0x70] sm:$0xff]
    %v89 = vld [vmem:[%s73 + $0x78] sm:$0xff]
    %s90 = scalar_lea.vmem %s3, 384
    %v91 = vld [vmem:[%s90] sm:$0xff]
    %v92 = vld [vmem:[%s90 + $0x8] sm:$0xff]
    %v93 = vld [vmem:[%s90 + $0x10] sm:$0xff]
    %v94 = vld [vmem:[%s90 + $0x18] sm:$0xff]
    %v95 = vld [vmem:[%s90 + $0x20] sm:$0xff]
    %v96 = vld [vmem:[%s90 + $0x28] sm:$0xff]
    %v97 = vld [vmem:[%s90 + $0x30] sm:$0xff]
    %v98 = vld [vmem:[%s90 + $0x38] sm:$0xff]
    %v99 = vld [vmem:[%s90 + $0x40] sm:$0xff]
    %v100 = vld [vmem:[%s90 + $0x48] sm:$0xff]
    %v101 = vld [vmem:[%s90 + $0x50] sm:$0xff]
    %v102 = vld [vmem:[%s90 + $0x58] sm:$0xff]
    %v103 = vld [vmem:[%s90 + $0x60] sm:$0xff]
    %v104 = vld [vmem:[%s90 + $0x68] sm:$0xff]
    %v105 = vld [vmem:[%s90 + $0x70] sm:$0xff]
    %v106 = vld [vmem:[%s90 + $0x78] sm:$0xff]
    %v107 = vld [vmem:[%s5] sm:$0xff]
    %v108 = vld [vmem:[%s5 + $0x8] sm:$0xff]
    %v109 = vld [vmem:[%s5 + $0x10] sm:$0xff]
    %v110 = vld [vmem:[%s5 + $0x18] sm:$0xff]
    %v111 = vld [vmem:[%s5 + $0x20] sm:$0xff]
    %v112 = vld [vmem:[%s5 + $0x28] sm:$0xff]
    %v113 = vld [vmem:[%s5 + $0x30] sm:$0xff]
    %v114 = vld [vmem:[%s5 + $0x38] sm:$0xff]
    %s115 = scalar_lea.vmem %s5, 64
    %v116 = vld [vmem:[%s115] sm:$0xff]
    %v117 = vld [vmem:[%s115 + $0x8] sm:$0xff]
    %v118 = vld [vmem:[%s115 + $0x10] sm:$0xff]
    %v119 = vld [vmem:[%s115 + $0x18] sm:$0xff]
    %v120 = vld [vmem:[%s115 + $0x20] sm:$0xff]
    %v121 = vld [vmem:[%s115 + $0x28] sm:$0xff]
    %v122 = vld [vmem:[%s115 + $0x30] sm:$0xff]
    %v123 = vld [vmem:[%s115 + $0x38] sm:$0xff]
    %s124 = scalar_lea.vmem %s5, 128
    %v125 = vld [vmem:[%s124] sm:$0xff]
    %v126 = vld [vmem:[%s124 + $0x8] sm:$0xff]
    %v127 = vld [vmem:[%s124 + $0x10] sm:$0xff]
    %v128 = vld [vmem:[%s124 + $0x18] sm:$0xff]
    %v129 = vld [vmem:[%s124 + $0x20] sm:$0xff]
    %v130 = vld [vmem:[%s124 + $0x28] sm:$0xff]
    %v131 = vld [vmem:[%s124 + $0x30] sm:$0xff]
    %v132 = vld [vmem:[%s124 + $0x38] sm:$0xff]
    %s133 = scalar_lea.vmem %s5, 192
    %v134 = vld [vmem:[%s133] sm:$0xff]
    %v135 = vld [vmem:[%s133 + $0x8] sm:$0xff]
    %v136 = vld [vmem:[%s133 + $0x10] sm:$0xff]
    %v137 = vld [vmem:[%s133 + $0x18] sm:$0xff]
    %v138 = vld [vmem:[%s133 + $0x20] sm:$0xff]
    %v139 = vld [vmem:[%s133 + $0x28] sm:$0xff]
    %v140 = vld [vmem:[%s133 + $0x30] sm:$0xff]
    %v141 = vld [vmem:[%s133 + $0x38] sm:$0xff]
    %s142 = scalar_lea.vmem %s5, 256
    %v143 = vld [vmem:[%s142] sm:$0xff]
    %v144 = vld [vmem:[%s142 + $0x8] sm:$0xff]
    %v145 = vld [vmem:[%s142 + $0x10] sm:$0xff]
    %v146 = vld [vmem:[%s142 + $0x18] sm:$0xff]
    %v147 = vld [vmem:[%s142 + $0x20] sm:$0xff]
    %v148 = vld [vmem:[%s142 + $0x28] sm:$0xff]
    %v149 = vld [vmem:[%s142 + $0x30] sm:$0xff]
    %v150 = vld [vmem:[%s142 + $0x38] sm:$0xff]
    %s151 = scalar_lea.vmem %s5, 320
    %v152 = vld [vmem:[%s151] sm:$0xff]
    %v153 = vld [vmem:[%s151 + $0x8] sm:$0xff]
    %v154 = vld [vmem:[%s151 + $0x10] sm:$0xff]
    %v155 = vld [vmem:[%s151 + $0x18] sm:$0xff]
    %v156 = vld [vmem:[%s151 + $0x20] sm:$0xff]
    %v157 = vld [vmem:[%s151 + $0x28] sm:$0xff]
    %v158 = vld [vmem:[%s151 + $0x30] sm:$0xff]
    %v159 = vld [vmem:[%s151 + $0x38] sm:$0xff]
    %161 = vrot.lane.b32.xlu0 %v33, 121
    %v162 = vpop.permute.xlu0 %161
    %vm163 = vcmask 31744
    %v164 = vsel %vm163, %v162, 0
    %vm166 = vcmask 1043456
    %v168 = vsel %vm166, %v37, 0
    %170 = vmatpush.msra.mxu0 0.0
    %171 = vmatpush.msra.mxu0 0.0
    %172 = vmatpush.msra.mxu0 0.0
    %173 = vmatpush.msra.mxu0 0.0
    %174 = vmatpush.msra.mxu0 0.0
    %175 = vmatpush.msra.mxu0 0.0
    %176 = vmatpush.msra.mxu0 0.0
    %177 = vmatpush.msra.mxu0 0.0
    %178 = vmatpush.msra.mxu0 0.0
    %179 = vmatpush.msra.mxu0 0.0
    %180 = vmatpush.msra.mxu0 0.0
    %181 = vmatpush.msra.mxu0 0.0
    %182 = vmatpush.msra.mxu0 0.0
    %183 = vmatpush.msra.mxu0 0.0
    %184 = vmatpush.msra.mxu0 0.0
    %185 = vmatpush.msra.mxu0 %v168
    %186 = vmatmul.f32.gmra.mxu0 %v164
    %v187 = vpop.f32.mrf.mxu0
    %v188 = vadd.f32 0.0, %v187
    %189 = vdwg.mxu0
    %v190 = vsel %vm163, %v33, 0
    %v193 = vsel %vm166, %v36, 0
    %195 = vmatpush.msra.mxu0 0.0
    %196 = vmatpush.msra.mxu0 0.0
    %197 = vmatpush.msra.mxu0 0.0
    %198 = vmatpush.msra.mxu0 0.0
    %199 = vmatpush.msra.mxu0 0.0
    %200 = vmatpush.msra.mxu0 0.0
    %201 = vmatpush.msra.mxu0 0.0
    %202 = vmatpush.msra.mxu0 0.0
    %203 = vmatpush.msra.mxu0 0.0
    %204 = vmatpush.msra.mxu0 0.0
    %205 = vmatpush.msra.mxu0 0.0
    %206 = vmatpush.msra.mxu0 0.0
    %207 = vmatpush.msra.mxu0 0.0
    %208 = vmatpush.msra.mxu0 0.0
    %209 = vmatpush.msra.mxu0 0.0
    %210 = vmatpush.msra.mxu0 %v193
    %211 = vmatmul.f32.gmra.mxu0 %v190
    %v212 = vpop.f32.mrf.mxu0
    %v213 = vadd.f32 %v188, %v212
    %214 = vdwg.mxu0
    %215 = vrot.lane.b32.xlu0 %v33, 114
    %v216 = vpop.permute.xlu0 %215
    %v217 = vsel %vm163, %v216, 0
    %v220 = vsel %vm166, %v38, 0
    %222 = vmatpush.msra.mxu0 0.0
    %223 = vmatpush.msra.mxu0 0.0
    %224 = vmatpush.msra.mxu0 0.0
    %225 = vmatpush.msra.mxu0 0.0
    %226 = vmatpush.msra.mxu0 0.0
    %227 = vmatpush.msra.mxu0 0.0
    %228 = vmatpush.msra.mxu0 0.0
    %229 = vmatpush.msra.mxu0 0.0
    %230 = vmatpush.msra.mxu0 0.0
    %231 = vmatpush.msra.mxu0 0.0
    %232 = vmatpush.msra.mxu0 0.0
    %233 = vmatpush.msra.mxu0 0.0
    %234 = vmatpush.msra.mxu0 0.0
    %235 = vmatpush.msra.mxu0 0.0
    %236 = vmatpush.msra.mxu0 0.0
    %237 = vmatpush.msra.mxu0 %v220
    %238 = vmatmul.f32.gmra.mxu0 %v217
    %v239 = vpop.f32.mrf.mxu0
    %v240 = vadd.f32 0.0, %v239
    %241 = vdwg.mxu0
    %v242 = vadd.f32 %v213, %v240
    %243 = vrot.lane.b32.xlu0 %v33, 107
    %v244 = vpop.permute.xlu0 %243
    %v245 = vsel %vm163, %v244, 0
    %v248 = vsel %vm166, %v39, 0
    %250 = vmatpush.msra.mxu0 0.0
    %251 = vmatpush.msra.mxu0 0.0
    %252 = vmatpush.msra.mxu0 0.0
    %253 = vmatpush.msra.mxu0 0.0
    %254 = vmatpush.msra.mxu0 0.0
    %255 = vmatpush.msra.mxu0 0.0
    %256 = vmatpush.msra.mxu0 0.0
    %257 = vmatpush.msra.mxu0 0.0
    %258 = vmatpush.msra.mxu0 0.0
    %259 = vmatpush.msra.mxu0 0.0
    %260 = vmatpush.msra.mxu0 0.0
    %261 = vmatpush.msra.mxu0 0.0
    %262 = vmatpush.msra.mxu0 0.0
    %263 = vmatpush.msra.mxu0 0.0
    %264 = vmatpush.msra.mxu0 0.0
    %265 = vmatpush.msra.mxu0 %v248
    %266 = vmatmul.f32.gmra.mxu0 %v245
    %v267 = vpop.f32.mrf.mxu0
    %v268 = vadd.f32 0.0, %v267
    %269 = vdwg.mxu0
    %v270 = vadd.f32 %v242, %v268
    %v272 = vperm.slane %v34, 0
    %v274 = vadd.f32 %v270, %v272
    %v275 = vmax.f32 %v274, 0.0
    %276 = vrot.lane.b32.xlu0 %v33, 120
    %v277 = vpop.permute.xlu0 %276
    %v278 = vsel %vm163, %v277, 0
    %280 = vmatpush.msra.mxu0 0.0
    %281 = vmatpush.msra.mxu0 0.0
    %282 = vmatpush.msra.mxu0 0.0
    %283 = vmatpush.msra.mxu0 0.0
    %284 = vmatpush.msra.mxu0 0.0
    %285 = vmatpush.msra.mxu0 0.0
    %286 = vmatpush.msra.mxu0 0.0
    %287 = vmatpush.msra.mxu0 0.0
    %288 = vmatpush.msra.mxu0 0.0
    %289 = vmatpush.msra.mxu0 0.0
    %290 = vmatpush.msra.mxu0 0.0
    %291 = vmatpush.msra.mxu0 0.0
    %292 = vmatpush.msra.mxu0 0.0
    %293 = vmatpush.msra.mxu0 0.0
    %294 = vmatpush.msra.mxu0 0.0
    %295 = vmatpush.msra.mxu0 %v168
    %296 = vmatmul.f32.gmra.mxu0 %v278
    %v297 = vpop.f32.mrf.mxu0
    %v298 = vadd.f32 0.0, %v297
    %299 = vdwg.mxu0
    %300 = vrot.lane.b32.xlu0 %v33, 127
    %v301 = vpop.permute.xlu0 %300
    %v302 = vsel %vm163, %v301, 0
    %304 = vmatpush.msra.mxu0 0.0
    %305 = vmatpush.msra.mxu0 0.0
    %306 = vmatpush.msra.mxu0 0.0
    %307 = vmatpush.msra.mxu0 0.0
    %308 = vmatpush.msra.mxu0 0.0
    %309 = vmatpush.msra.mxu0 0.0
    %310 = vmatpush.msra.mxu0 0.0
    %311 = vmatpush.msra.mxu0 0.0
    %312 = vmatpush.msra.mxu0 0.0
    %313 = vmatpush.msra.mxu0 0.0
    %314 = vmatpush.msra.mxu0 0.0
    %315 = vmatpush.msra.mxu0 0.0
    %316 = vmatpush.msra.mxu0 0.0
    %317 = vmatpush.msra.mxu0 0.0
    %318 = vmatpush.msra.mxu0 0.0
    %319 = vmatpush.msra.mxu0 %v193
    %320 = vmatmul.f32.gmra.mxu0 %v302
    %v321 = vpop.f32.mrf.mxu0
    %v322 = vadd.f32 %v298, %v321
    %323 = vdwg.mxu0
    %324 = vrot.lane.b32.xlu0 %v33, 113
    %v325 = vpop.permute.xlu0 %324
    %v326 = vsel %vm163, %v325, 0
    %328 = vmatpush.msra.mxu0 0.0
    %329 = vmatpush.msra.mxu0 0.0
    %330 = vmatpush.msra.mxu0 0.0
    %331 = vmatpush.msra.mxu0 0.0
    %332 = vmatpush.msra.mxu0 0.0
    %333 = vmatpush.msra.mxu0 0.0
    %334 = vmatpush.msra.mxu0 0.0
    %335 = vmatpush.msra.mxu0 0.0
    %336 = vmatpush.msra.mxu0 0.0
    %337 = vmatpush.msra.mxu0 0.0
    %338 = vmatpush.msra.mxu0 0.0
    %339 = vmatpush.msra.mxu0 0.0
    %340 = vmatpush.msra.mxu0 0.0
    %341 = vmatpush.msra.mxu0 0.0
    %342 = vmatpush.msra.mxu0 0.0
    %343 = vmatpush.msra.mxu0 %v220
    %344 = vmatmul.f32.gmra.mxu0 %v326
    %v345 = vpop.f32.mrf.mxu0
    %v346 = vadd.f32 0.0, %v345
    %347 = vdwg.mxu0
    %v348 = vadd.f32 %v322, %v346
    %349 = vrot.lane.b32.xlu0 %v33, 106
    %v350 = vpop.permute.xlu0 %349
    %v351 = vsel %vm163, %v350, 0
    %353 = vmatpush.msra.mxu0 0.0
    %354 = vmatpush.msra.mxu0 0.0
    %355 = vmatpush.msra.mxu0 0.0
    %356 = vmatpush.msra.mxu0 0.0
    %357 = vmatpush.msra.mxu0 0.0
    %358 = vmatpush.msra.mxu0 0.0
    %359 = vmatpush.msra.mxu0 0.0
    %360 = vmatpush.msra.mxu0 0.0
    %361 = vmatpush.msra.mxu0 0.0
    %362 = vmatpush.msra.mxu0 0.0
    %363 = vmatpush.msra.mxu0 0.0
    %364 = vmatpush.msra.mxu0 0.0
    %365 = vmatpush.msra.mxu0 0.0
    %366 = vmatpush.msra.mxu0 0.0
    %367 = vmatpush.msra.mxu0 0.0
    %368 = vmatpush.msra.mxu0 %v248
    %369 = vmatmul.f32.gmra.mxu0 %v351
    %v370 = vpop.f32.mrf.mxu0
    %v371 = vadd.f32 0.0, %v370
    %372 = vdwg.mxu0
    %v373 = vadd.f32 %v348, %v371
    %v374 = vadd.f32 %v373, %v272
    %v375 = vmax.f32 %v374, 0.0
    %376 = vrot.lane.b32.xlu0 %v33, 119
    %v377 = vpop.permute.xlu0 %376
    %v378 = vsel %vm163, %v377, 0
    %380 = vmatpush.msra.mxu0 0.0
    %381 = vmatpush.msra.mxu0 0.0
    %382 = vmatpush.msra.mxu0 0.0
    %383 = vmatpush.msra.mxu0 0.0
    %384 = vmatpush.msra.mxu0 0.0
    %385 = vmatpush.msra.mxu0 0.0
    %386 = vmatpush.msra.mxu0 0.0
    %387 = vmatpush.msra.mxu0 0.0
    %388 = vmatpush.msra.mxu0 0.0
    %389 = vmatpush.msra.mxu0 0.0
    %390 = vmatpush.msra.mxu0 0.0
    %391 = vmatpush.msra.mxu0 0.0
    %392 = vmatpush.msra.mxu0 0.0
    %393 = vmatpush.msra.mxu0 0.0
    %394 = vmatpush.msra.mxu0 0.0
    %395 = vmatpush.msra.mxu0 %v168
    %396 = vmatmul.f32.gmra.mxu0 %v378
    %v397 = vpop.f32.mrf.mxu0
    %v398 = vadd.f32 0.0, %v397
    %399 = vdwg.mxu0
    %400 = vrot.lane.b32.xlu0 %v33, 126
    %v401 = vpop.permute.xlu0 %400
    %v402 = vsel %vm163, %v401, 0
    %404 = vmatpush.msra.mxu0 0.0
    %405 = vmatpush.msra.mxu0 0.0
    %406 = vmatpush.msra.mxu0 0.0
    %407 = vmatpush.msra.mxu0 0.0
    %408 = vmatpush.msra.mxu0 0.0
    %409 = vmatpush.msra.mxu0 0.0
    %410 = vmatpush.msra.mxu0 0.0
    %411 = vmatpush.msra.mxu0 0.0
    %412 = vmatpush.msra.mxu0 0.0
    %413 = vmatpush.msra.mxu0 0.0
    %414 = vmatpush.msra.mxu0 0.0
    %415 = vmatpush.msra.mxu0 0.0
    %416 = vmatpush.msra.mxu0 0.0
    %417 = vmatpush.msra.mxu0 0.0
    %418 = vmatpush.msra.mxu0 0.0
    %419 = vmatpush.msra.mxu0 %v193
    %420 = vmatmul.f32.gmra.mxu0 %v402
    %v421 = vpop.f32.mrf.mxu0
    %v422 = vadd.f32 %v398, %v421
    %423 = vdwg.mxu0
    %424 = vrot.lane.b32.xlu0 %v33, 112
    %v425 = vpop.permute.xlu0 %424
    %v426 = vsel %vm163, %v425, 0
    %428 = vmatpush.msra.mxu0 0.0
    %429 = vmatpush.msra.mxu0 0.0
    %430 = vmatpush.msra.mxu0 0.0
    %431 = vmatpush.msra.mxu0 0.0
    %432 = vmatpush.msra.mxu0 0.0
    %433 = vmatpush.msra.mxu0 0.0
    %434 = vmatpush.msra.mxu0 0.0
    %435 = vmatpush.msra.mxu0 0.0
    %436 = vmatpush.msra.mxu0 0.0
    %437 = vmatpush.msra.mxu0 0.0
    %438 = vmatpush.msra.mxu0 0.0
    %439 = vmatpush.msra.mxu0 0.0
    %440 = vmatpush.msra.mxu0 0.0
    %441 = vmatpush.msra.mxu0 0.0
    %442 = vmatpush.msra.mxu0 0.0
    %443 = vmatpush.msra.mxu0 %v220
    %444 = vmatmul.f32.gmra.mxu0 %v426
    %v445 = vpop.f32.mrf.mxu0
    %v446 = vadd.f32 0.0, %v445
    %447 = vdwg.mxu0
    %v448 = vadd.f32 %v422, %v446
    %449 = vrot.lane.b32.xlu0 %v33, 105
    %v450 = vpop.permute.xlu0 %449
    %v451 = vsel %vm163, %v450, 0
    %453 = vmatpush.msra.mxu0 0.0
    %454 = vmatpush.msra.mxu0 0.0
    %455 = vmatpush.msra.mxu0 0.0
    %456 = vmatpush.msra.mxu0 0.0
    %457 = vmatpush.msra.mxu0 0.0
    %458 = vmatpush.msra.mxu0 0.0
    %459 = vmatpush.msra.mxu0 0.0
    %460 = vmatpush.msra.mxu0 0.0
    %461 = vmatpush.msra.mxu0 0.0
    %462 = vmatpush.msra.mxu0 0.0
    %463 = vmatpush.msra.mxu0 0.0
    %464 = vmatpush.msra.mxu0 0.0
    %465 = vmatpush.msra.mxu0 0.0
    %466 = vmatpush.msra.mxu0 0.0
    %467 = vmatpush.msra.mxu0 0.0
    %468 = vmatpush.msra.mxu0 %v248
    %469 = vmatmul.f32.gmra.mxu0 %v451
    %v470 = vpop.f32.mrf.mxu0
    %v471 = vadd.f32 0.0, %v470
    %472 = vdwg.mxu0
    %v473 = vadd.f32 %v448, %v471
    %v474 = vadd.f32 %v473, %v272
    %v475 = vmax.f32 %v474, 0.0
    %476 = vrot.lane.b32.xlu0 %v33, 118
    %v477 = vpop.permute.xlu0 %476
    %v478 = vsel %vm163, %v477, 0
    %480 = vmatpush.msra.mxu0 0.0
    %481 = vmatpush.msra.mxu0 0.0
    %482 = vmatpush.msra.mxu0 0.0
    %483 = vmatpush.msra.mxu0 0.0
    %484 = vmatpush.msra.mxu0 0.0
    %485 = vmatpush.msra.mxu0 0.0
    %486 = vmatpush.msra.mxu0 0.0
    %487 = vmatpush.msra.mxu0 0.0
    %488 = vmatpush.msra.mxu0 0.0
    %489 = vmatpush.msra.mxu0 0.0
    %490 = vmatpush.msra.mxu0 0.0
    %491 = vmatpush.msra.mxu0 0.0
    %492 = vmatpush.msra.mxu0 0.0
    %493 = vmatpush.msra.mxu0 0.0
    %494 = vmatpush.msra.mxu0 0.0
    %495 = vmatpush.msra.mxu0 %v168
    %496 = vmatmul.f32.gmra.mxu0 %v478
    %v497 = vpop.f32.mrf.mxu0
    %v498 = vadd.f32 0.0, %v497
    %499 = vdwg.mxu0
    %500 = vrot.lane.b32.xlu0 %v33, 125
    %v501 = vpop.permute.xlu0 %500
    %v502 = vsel %vm163, %v501, 0
    %504 = vmatpush.msra.mxu0 0.0
    %505 = vmatpush.msra.mxu0 0.0
    %506 = vmatpush.msra.mxu0 0.0
    %507 = vmatpush.msra.mxu0 0.0
    %508 = vmatpush.msra.mxu0 0.0
    %509 = vmatpush.msra.mxu0 0.0
    %510 = vmatpush.msra.mxu0 0.0
    %511 = vmatpush.msra.mxu0 0.0
    %512 = vmatpush.msra.mxu0 0.0
    %513 = vmatpush.msra.mxu0 0.0
    %514 = vmatpush.msra.mxu0 0.0
    %515 = vmatpush.msra.mxu0 0.0
    %516 = vmatpush.msra.mxu0 0.0
    %517 = vmatpush.msra.mxu0 0.0
    %518 = vmatpush.msra.mxu0 0.0
    %519 = vmatpush.msra.mxu0 %v193
    %520 = vmatmul.f32.gmra.mxu0 %v502
    %v521 = vpop.f32.mrf.mxu0
    %v522 = vadd.f32 %v498, %v521
    %523 = vdwg.mxu0
    %524 = vrot.lane.b32.xlu0 %v33, 111
    %v525 = vpop.permute.xlu0 %524
    %v526 = vsel %vm163, %v525, 0
    %528 = vmatpush.msra.mxu0 0.0
    %529 = vmatpush.msra.mxu0 0.0
    %530 = vmatpush.msra.mxu0 0.0
    %531 = vmatpush.msra.mxu0 0.0
    %532 = vmatpush.msra.mxu0 0.0
    %533 = vmatpush.msra.mxu0 0.0
    %534 = vmatpush.msra.mxu0 0.0
    %535 = vmatpush.msra.mxu0 0.0
    %536 = vmatpush.msra.mxu0 0.0
    %537 = vmatpush.msra.mxu0 0.0
    %538 = vmatpush.msra.mxu0 0.0
    %539 = vmatpush.msra.mxu0 0.0
    %540 = vmatpush.msra.mxu0 0.0
    %541 = vmatpush.msra.mxu0 0.0
    %542 = vmatpush.msra.mxu0 0.0
    %543 = vmatpush.msra.mxu0 %v220
    %544 = vmatmul.f32.gmra.mxu0 %v526
    %v545 = vpop.f32.mrf.mxu0
    %v546 = vadd.f32 0.0, %v545
    %547 = vdwg.mxu0
    %v548 = vadd.f32 %v522, %v546
    %549 = vrot.lane.b32.xlu0 %v33, 104
    %v550 = vpop.permute.xlu0 %549
    %v551 = vsel %vm163, %v550, 0
    %553 = vmatpush.msra.mxu0 0.0
    %554 = vmatpush.msra.mxu0 0.0
    %555 = vmatpush.msra.mxu0 0.0
    %556 = vmatpush.msra.mxu0 0.0
    %557 = vmatpush.msra.mxu0 0.0
    %558 = vmatpush.msra.mxu0 0.0
    %559 = vmatpush.msra.mxu0 0.0
    %560 = vmatpush.msra.mxu0 0.0
    %561 = vmatpush.msra.mxu0 0.0
    %562 = vmatpush.msra.mxu0 0.0
    %563 = vmatpush.msra.mxu0 0.0
    %564 = vmatpush.msra.mxu0 0.0
    %565 = vmatpush.msra.mxu0 0.0
    %566 = vmatpush.msra.mxu0 0.0
    %567 = vmatpush.msra.mxu0 0.0
    %568 = vmatpush.msra.mxu0 %v248
    %569 = vmatmul.f32.gmra.mxu0 %v551
    %v570 = vpop.f32.mrf.mxu0
    %v571 = vadd.f32 0.0, %v570
    %572 = vdwg.mxu0
    %v573 = vadd.f32 %v548, %v571
    %v574 = vadd.f32 %v573, %v272
    %v575 = vmax.f32 %v574, 0.0
    %576 = vmatpush.msra.mxu0 0.0
    %577 = vmatpush.msra.mxu0 0.0
    %578 = vmatpush.msra.mxu0 0.0
    %579 = vmatpush.msra.mxu0 0.0
    %580 = vmatpush.msra.mxu0 0.0
    %581 = vmatpush.msra.mxu0 0.0
    %582 = vmatpush.msra.mxu0 0.0
    %583 = vmatpush.msra.mxu0 0.0
    %584 = vmatpush.msra.mxu0 0.0
    %585 = vmatpush.msra.mxu0 0.0
    %586 = vmatpush.msra.mxu0 0.0
    %587 = vmatpush.msra.mxu0 0.0
    %588 = vmatpush.msra.mxu0 0.0
    %589 = vmatpush.msra.mxu0 0.0
    %590 = vmatpush.msra.mxu0 0.0
    %591 = vmatpush.msra.mxu0 %v168
    %592 = vmatmul.f32.gmra.mxu0 %v217
    %v593 = vpop.f32.mrf.mxu0
    %v594 = vadd.f32 0.0, %v593
    %595 = vdwg.mxu0
    %596 = vmatpush.msra.mxu0 0.0
    %597 = vmatpush.msra.mxu0 0.0
    %598 = vmatpush.msra.mxu0 0.0
    %599 = vmatpush.msra.mxu0 0.0
    %600 = vmatpush.msra.mxu0 0.0
    %601 = vmatpush.msra.mxu0 0.0
    %602 = vmatpush.msra.mxu0 0.0
    %603 = vmatpush.msra.mxu0 0.0
    %604 = vmatpush.msra.mxu0 0.0
    %605 = vmatpush.msra.mxu0 0.0
    %606 = vmatpush.msra.mxu0 0.0
    %607 = vmatpush.msra.mxu0 0.0
    %608 = vmatpush.msra.mxu0 0.0
    %609 = vmatpush.msra.mxu0 0.0
    %610 = vmatpush.msra.mxu0 0.0
    %611 = vmatpush.msra.mxu0 %v193
    %612 = vmatmul.f32.gmra.mxu0 %v164
    %v613 = vpop.f32.mrf.mxu0
    %v614 = vadd.f32 %v594, %v613
    %615 = vdwg.mxu0
    %616 = vmatpush.msra.mxu0 0.0
    %617 = vmatpush.msra.mxu0 0.0
    %618 = vmatpush.msra.mxu0 0.0
    %619 = vmatpush.msra.mxu0 0.0
    %620 = vmatpush.msra.mxu0 0.0
    %621 = vmatpush.msra.mxu0 0.0
    %622 = vmatpush.msra.mxu0 0.0
    %623 = vmatpush.msra.mxu0 0.0
    %624 = vmatpush.msra.mxu0 0.0
    %625 = vmatpush.msra.mxu0 0.0
    %626 = vmatpush.msra.mxu0 0.0
    %627 = vmatpush.msra.mxu0 0.0
    %628 = vmatpush.msra.mxu0 0.0
    %629 = vmatpush.msra.mxu0 0.0
    %630 = vmatpush.msra.mxu0 0.0
    %631 = vmatpush.msra.mxu0 %v220
    %632 = vmatmul.f32.gmra.mxu0 %v245
    %v633 = vpop.f32.mrf.mxu0
    %v634 = vadd.f32 0.0, %v633
    %635 = vdwg.mxu0
    %v636 = vadd.f32 %v614, %v634
    %637 = vrot.lane.b32.xlu0 %v33, 100
    %v638 = vpop.permute.xlu0 %637
    %v639 = vsel %vm163, %v638, 0
    %641 = vmatpush.msra.mxu0 0.0
    %642 = vmatpush.msra.mxu0 0.0
    %643 = vmatpush.msra.mxu0 0.0
    %644 = vmatpush.msra.mxu0 0.0
    %645 = vmatpush.msra.mxu0 0.0
    %646 = vmatpush.msra.mxu0 0.0
    %647 = vmatpush.msra.mxu0 0.0
    %648 = vmatpush.msra.mxu0 0.0
    %649 = vmatpush.msra.mxu0 0.0
    %650 = vmatpush.msra.mxu0 0.0
    %651 = vmatpush.msra.mxu0 0.0
    %652 = vmatpush.msra.mxu0 0.0
    %653 = vmatpush.msra.mxu0 0.0
    %654 = vmatpush.msra.mxu0 0.0
    %655 = vmatpush.msra.mxu0 0.0
    %656 = vmatpush.msra.mxu0 %v248
    %657 = vmatmul.f32.gmra.mxu0 %v639
    %v658 = vpop.f32.mrf.mxu0
    %v659 = vadd.f32 0.0, %v658
    %660 = vdwg.mxu0
    %v661 = vadd.f32 %v636, %v659
    %v662 = vadd.f32 %v661, %v272
    %v663 = vmax.f32 %v662, 0.0
    %664 = vmatpush.msra.mxu0 0.0
    %665 = vmatpush.msra.mxu0 0.0
    %666 = vmatpush.msra.mxu0 0.0
    %667 = vmatpush.msra.mxu0 0.0
    %668 = vmatpush.msra.mxu0 0.0
    %669 = vmatpush.msra.mxu0 0.0
    %670 = vmatpush.msra.mxu0 0.0
    %671 = vmatpush.msra.mxu0 0.0
    %672 = vmatpush.msra.mxu0 0.0
    %673 = vmatpush.msra.mxu0 0.0
    %674 = vmatpush.msra.mxu0 0.0
    %675 = vmatpush.msra.mxu0 0.0
    %676 = vmatpush.msra.mxu0 0.0
    %677 = vmatpush.msra.mxu0 0.0
    %678 = vmatpush.msra.mxu0 0.0
    %679 = vmatpush.msra.mxu0 %v168
    %680 = vmatmul.f32.gmra.mxu0 %v326
    %v681 = vpop.f32.mrf.mxu0
    %v682 = vadd.f32 0.0, %v681
    %683 = vdwg.mxu0
    %684 = vmatpush.msra.mxu0 0.0
    %685 = vmatpush.msra.mxu0 0.0
    %686 = vmatpush.msra.mxu0 0.0
    %687 = vmatpush.msra.mxu0 0.0
    %688 = vmatpush.msra.mxu0 0.0
    %689 = vmatpush.msra.mxu0 0.0
    %690 = vmatpush.msra.mxu0 0.0
    %691 = vmatpush.msra.mxu0 0.0
    %692 = vmatpush.msra.mxu0 0.0
    %693 = vmatpush.msra.mxu0 0.0
    %694 = vmatpush.msra.mxu0 0.0
    %695 = vmatpush.msra.mxu0 0.0
    %696 = vmatpush.msra.mxu0 0.0
    %697 = vmatpush.msra.mxu0 0.0
    %698 = vmatpush.msra.mxu0 0.0
    %699 = vmatpush.msra.mxu0 %v193
    %700 = vmatmul.f32.gmra.mxu0 %v278
    %v701 = vpop.f32.mrf.mxu0
    %v702 = vadd.f32 %v682, %v701
    %703 = vdwg.mxu0
    %704 = vmatpush.msra.mxu0 0.0
    %705 = vmatpush.msra.mxu0 0.0
    %706 = vmatpush.msra.mxu0 0.0
    %707 = vmatpush.msra.mxu0 0.0
    %708 = vmatpush.msra.mxu0 0.0
    %709 = vmatpush.msra.mxu0 0.0
    %710 = vmatpush.msra.mxu0 0.0
    %711 = vmatpush.msra.mxu0 0.0
    %712 = vmatpush.msra.mxu0 0.0
    %713 = vmatpush.msra.mxu0 0.0
    %714 = vmatpush.msra.mxu0 0.0
    %715 = vmatpush.msra.mxu0 0.0
    %716 = vmatpush.msra.mxu0 0.0
    %717 = vmatpush.msra.mxu0 0.0
    %718 = vmatpush.msra.mxu0 0.0
    %719 = vmatpush.msra.mxu0 %v220
    %720 = vmatmul.f32.gmra.mxu0 %v351
    %v721 = vpop.f32.mrf.mxu0
    %v722 = vadd.f32 0.0, %v721
    %723 = vdwg.mxu0
    %v724 = vadd.f32 %v702, %v722
    %725 = vrot.lane.b32.xlu0 %v33, 99
    %v726 = vpop.permute.xlu0 %725
    %v727 = vsel %vm163, %v726, 0
    %729 = vmatpush.msra.mxu0 0.0
    %730 = vmatpush.msra.mxu0 0.0
    %731 = vmatpush.msra.mxu0 0.0
    %732 = vmatpush.msra.mxu0 0.0
    %733 = vmatpush.msra.mxu0 0.0
    %734 = vmatpush.msra.mxu0 0.0
    %735 = vmatpush.msra.mxu0 0.0
    %736 = vmatpush.msra.mxu0 0.0
    %737 = vmatpush.msra.mxu0 0.0
    %738 = vmatpush.msra.mxu0 0.0
    %739 = vmatpush.msra.mxu0 0.0
    %740 = vmatpush.msra.mxu0 0.0
    %741 = vmatpush.msra.mxu0 0.0
    %742 = vmatpush.msra.mxu0 0.0
    %743 = vmatpush.msra.mxu0 0.0
    %744 = vmatpush.msra.mxu0 %v248
    %745 = vmatmul.f32.gmra.mxu0 %v727
    %v746 = vpop.f32.mrf.mxu0
    %v747 = vadd.f32 0.0, %v746
    %748 = vdwg.mxu0
    %v749 = vadd.f32 %v724, %v747
    %v750 = vadd.f32 %v749, %v272
    %v751 = vmax.f32 %v750, 0.0
    %752 = vmatpush.msra.mxu0 0.0
    %753 = vmatpush.msra.mxu0 0.0
    %754 = vmatpush.msra.mxu0 0.0
    %755 = vmatpush.msra.mxu0 0.0
    %756 = vmatpush.msra.mxu0 0.0
    %757 = vmatpush.msra.mxu0 0.0
    %758 = vmatpush.msra.mxu0 0.0
    %759 = vmatpush.msra.mxu0 0.0
    %760 = vmatpush.msra.mxu0 0.0
    %761 = vmatpush.msra.mxu0 0.0
    %762 = vmatpush.msra.mxu0 0.0
    %763 = vmatpush.msra.mxu0 0.0
    %764 = vmatpush.msra.mxu0 0.0
    %765 = vmatpush.msra.mxu0 0.0
    %766 = vmatpush.msra.mxu0 0.0
    %767 = vmatpush.msra.mxu0 %v168
    %768 = vmatmul.f32.gmra.mxu0 %v426
    %v769 = vpop.f32.mrf.mxu0
    %v770 = vadd.f32 0.0, %v769
    %771 = vdwg.mxu0
    %772 = vmatpush.msra.mxu0 0.0
    %773 = vmatpush.msra.mxu0 0.0
    %774 = vmatpush.msra.mxu0 0.0
    %775 = vmatpush.msra.mxu0 0.0
    %776 = vmatpush.msra.mxu0 0.0
    %777 = vmatpush.msra.mxu0 0.0
    %778 = vmatpush.msra.mxu0 0.0
    %779 = vmatpush.msra.mxu0 0.0
    %780 = vmatpush.msra.mxu0 0.0
    %781 = vmatpush.msra.mxu0 0.0
    %782 = vmatpush.msra.mxu0 0.0
    %783 = vmatpush.msra.mxu0 0.0
    %784 = vmatpush.msra.mxu0 0.0
    %785 = vmatpush.msra.mxu0 0.0
    %786 = vmatpush.msra.mxu0 0.0
    %787 = vmatpush.msra.mxu0 %v193
    %788 = vmatmul.f32.gmra.mxu0 %v378
    %v789 = vpop.f32.mrf.mxu0
    %v790 = vadd.f32 %v770, %v789
    %791 = vdwg.mxu0
    %792 = vmatpush.msra.mxu0 0.0
    %793 = vmatpush.msra.mxu0 0.0
    %794 = vmatpush.msra.mxu0 0.0
    %795 = vmatpush.msra.mxu0 0.0
    %796 = vmatpush.msra.mxu0 0.0
    %797 = vmatpush.msra.mxu0 0.0
    %798 = vmatpush.msra.mxu0 0.0
    %799 = vmatpush.msra.mxu0 0.0
    %800 = vmatpush.msra.mxu0 0.0
    %801 = vmatpush.msra.mxu0 0.0
    %802 = vmatpush.msra.mxu0 0.0
    %803 = vmatpush.msra.mxu0 0.0
    %804 = vmatpush.msra.mxu0 0.0
    %805 = vmatpush.msra.mxu0 0.0
    %806 = vmatpush.msra.mxu0 0.0
    %807 = vmatpush.msra.mxu0 %v220
    %808 = vmatmul.f32.gmra.mxu0 %v451
    %v809 = vpop.f32.mrf.mxu0
    %v810 = vadd.f32 0.0, %v809
    %811 = vdwg.mxu0
    %v812 = vadd.f32 %v790, %v810
    %813 = vrot.lane.b32.xlu0 %v33, 98
    %v814 = vpop.permute.xlu0 %813
    %v815 = vsel %vm163, %v814, 0
    %817 = vmatpush.msra.mxu0 0.0
    %818 = vmatpush.msra.mxu0 0.0
    %819 = vmatpush.msra.mxu0 0.0
    %820 = vmatpush.msra.mxu0 0.0
    %821 = vmatpush.msra.mxu0 0.0
    %822 = vmatpush.msra.mxu0 0.0
    %823 = vmatpush.msra.mxu0 0.0
    %824 = vmatpush.msra.mxu0 0.0
    %825 = vmatpush.msra.mxu0 0.0
    %826 = vmatpush.msra.mxu0 0.0
    %827 = vmatpush.msra.mxu0 0.0
    %828 = vmatpush.msra.mxu0 0.0
    %829 = vmatpush.msra.mxu0 0.0
    %830 = vmatpush.msra.mxu0 0.0
    %831 = vmatpush.msra.mxu0 0.0
    %832 = vmatpush.msra.mxu0 %v248
    %833 = vmatmul.f32.gmra.mxu0 %v815
    %v834 = vpop.f32.mrf.mxu0
    %v835 = vadd.f32 0.0, %v834
    %836 = vdwg.mxu0
    %v837 = vadd.f32 %v812, %v835
    %v838 = vadd.f32 %v837, %v272
    %v839 = vmax.f32 %v838, 0.0
    %840 = vmatpush.msra.mxu0 0.0
    %841 = vmatpush.msra.mxu0 0.0
    %842 = vmatpush.msra.mxu0 0.0
    %843 = vmatpush.msra.mxu0 0.0
    %844 = vmatpush.msra.mxu0 0.0
    %845 = vmatpush.msra.mxu0 0.0
    %846 = vmatpush.msra.mxu0 0.0
    %847 = vmatpush.msra.mxu0 0.0
    %848 = vmatpush.msra.mxu0 0.0
    %849 = vmatpush.msra.mxu0 0.0
    %850 = vmatpush.msra.mxu0 0.0
    %851 = vmatpush.msra.mxu0 0.0
    %852 = vmatpush.msra.mxu0 0.0
    %853 = vmatpush.msra.mxu0 0.0
    %854 = vmatpush.msra.mxu0 0.0
    %855 = vmatpush.msra.mxu0 %v168
    %856 = vmatmul.f32.gmra.mxu0 %v526
    %v857 = vpop.f32.mrf.mxu0
    %v858 = vadd.f32 0.0, %v857
    %859 = vdwg.mxu0
    %860 = vmatpush.msra.mxu0 0.0
    %861 = vmatpush.msra.mxu0 0.0
    %862 = vmatpush.msra.mxu0 0.0
    %863 = vmatpush.msra.mxu0 0.0
    %864 = vmatpush.msra.mxu0 0.0
    %865 = vmatpush.msra.mxu0 0.0
    %866 = vmatpush.msra.mxu0 0.0
    %867 = vmatpush.msra.mxu0 0.0
    %868 = vmatpush.msra.mxu0 0.0
    %869 = vmatpush.msra.mxu0 0.0
    %870 = vmatpush.msra.mxu0 0.0
    %871 = vmatpush.msra.mxu0 0.0
    %872 = vmatpush.msra.mxu0 0.0
    %873 = vmatpush.msra.mxu0 0.0
    %874 = vmatpush.msra.mxu0 0.0
    %875 = vmatpush.msra.mxu0 %v193
    %876 = vmatmul.f32.gmra.mxu0 %v478
    %v877 = vpop.f32.mrf.mxu0
    %v878 = vadd.f32 %v858, %v877
    %879 = vdwg.mxu0
    %880 = vmatpush.msra.mxu0 0.0
    %881 = vmatpush.msra.mxu0 0.0
    %882 = vmatpush.msra.mxu0 0.0
    %883 = vmatpush.msra.mxu0 0.0
    %884 = vmatpush.msra.mxu0 0.0
    %885 = vmatpush.msra.mxu0 0.0
    %886 = vmatpush.msra.mxu0 0.0
    %887 = vmatpush.msra.mxu0 0.0
    %888 = vmatpush.msra.mxu0 0.0
    %889 = vmatpush.msra.mxu0 0.0
    %890 = vmatpush.msra.mxu0 0.0
    %891 = vmatpush.msra.mxu0 0.0
    %892 = vmatpush.msra.mxu0 0.0
    %893 = vmatpush.msra.mxu0 0.0
    %894 = vmatpush.msra.mxu0 0.0
    %895 = vmatpush.msra.mxu0 %v220
    %896 = vmatmul.f32.gmra.mxu0 %v551
    %v897 = vpop.f32.mrf.mxu0
    %v898 = vadd.f32 0.0, %v897
    %899 = vdwg.mxu0
    %v900 = vadd.f32 %v878, %v898
    %901 = vrot.lane.b32.xlu0 %v33, 97
    %v902 = vpop.permute.xlu0 %901
    %v903 = vsel %vm163, %v902, 0
    %905 = vmatpush.msra.mxu0 0.0
    %906 = vmatpush.msra.mxu0 0.0
    %907 = vmatpush.msra.mxu0 0.0
    %908 = vmatpush.msra.mxu0 0.0
    %909 = vmatpush.msra.mxu0 0.0
    %910 = vmatpush.msra.mxu0 0.0
    %911 = vmatpush.msra.mxu0 0.0
    %912 = vmatpush.msra.mxu0 0.0
    %913 = vmatpush.msra.mxu0 0.0
    %914 = vmatpush.msra.mxu0 0.0
    %915 = vmatpush.msra.mxu0 0.0
    %916 = vmatpush.msra.mxu0 0.0
    %917 = vmatpush.msra.mxu0 0.0
    %918 = vmatpush.msra.mxu0 0.0
    %919 = vmatpush.msra.mxu0 0.0
    %920 = vmatpush.msra.mxu0 %v248
    %921 = vmatmul.f32.gmra.mxu0 %v903
    %v922 = vpop.f32.mrf.mxu0
    %v923 = vadd.f32 0.0, %v922
    %924 = vdwg.mxu0
    %v925 = vadd.f32 %v900, %v923
    %v926 = vadd.f32 %v925, %v272
    %v927 = vmax.f32 %v926, 0.0
    %928 = vmatpush.msra.mxu0 0.0
    %929 = vmatpush.msra.mxu0 0.0
    %930 = vmatpush.msra.mxu0 0.0
    %931 = vmatpush.msra.mxu0 0.0
    %932 = vmatpush.msra.mxu0 0.0
    %933 = vmatpush.msra.mxu0 0.0
    %934 = vmatpush.msra.mxu0 0.0
    %935 = vmatpush.msra.mxu0 0.0
    %936 = vmatpush.msra.mxu0 0.0
    %937 = vmatpush.msra.mxu0 0.0
    %938 = vmatpush.msra.mxu0 0.0
    %939 = vmatpush.msra.mxu0 0.0
    %940 = vmatpush.msra.mxu0 0.0
    %941 = vmatpush.msra.mxu0 0.0
    %942 = vmatpush.msra.mxu0 0.0
    %943 = vmatpush.msra.mxu0 %v168
    %944 = vmatmul.f32.gmra.mxu0 %v245
    %v945 = vpop.f32.mrf.mxu0
    %v946 = vadd.f32 0.0, %v945
    %947 = vdwg.mxu0
    %948 = vmatpush.msra.mxu0 0.0
    %949 = vmatpush.msra.mxu0 0.0
    %950 = vmatpush.msra.mxu0 0.0
    %951 = vmatpush.msra.mxu0 0.0
    %952 = vmatpush.msra.mxu0 0.0
    %953 = vmatpush.msra.mxu0 0.0
    %954 = vmatpush.msra.mxu0 0.0
    %955 = vmatpush.msra.mxu0 0.0
    %956 = vmatpush.msra.mxu0 0.0
    %957 = vmatpush.msra.mxu0 0.0
    %958 = vmatpush.msra.mxu0 0.0
    %959 = vmatpush.msra.mxu0 0.0
    %960 = vmatpush.msra.mxu0 0.0
    %961 = vmatpush.msra.mxu0 0.0
    %962 = vmatpush.msra.mxu0 0.0
    %963 = vmatpush.msra.mxu0 %v193
    %964 = vmatmul.f32.gmra.mxu0 %v217
    %v965 = vpop.f32.mrf.mxu0
    %v966 = vadd.f32 %v946, %v965
    %967 = vdwg.mxu0
    %968 = vmatpush.msra.mxu0 0.0
    %969 = vmatpush.msra.mxu0 0.0
    %970 = vmatpush.msra.mxu0 0.0
    %971 = vmatpush.msra.mxu0 0.0
    %972 = vmatpush.msra.mxu0 0.0
    %973 = vmatpush.msra.mxu0 0.0
    %974 = vmatpush.msra.mxu0 0.0
    %975 = vmatpush.msra.mxu0 0.0
    %976 = vmatpush.msra.mxu0 0.0
    %977 = vmatpush.msra.mxu0 0.0
    %978 = vmatpush.msra.mxu0 0.0
    %979 = vmatpush.msra.mxu0 0.0
    %980 = vmatpush.msra.mxu0 0.0
    %981 = vmatpush.msra.mxu0 0.0
    %982 = vmatpush.msra.mxu0 0.0
    %983 = vmatpush.msra.mxu0 %v220
    %984 = vmatmul.f32.gmra.mxu0 %v639
    %v985 = vpop.f32.mrf.mxu0
    %v986 = vadd.f32 0.0, %v985
    %987 = vdwg.mxu0
    %v988 = vadd.f32 %v966, %v986
    %989 = vrot.lane.b32.xlu0 %v33, 93
    %v990 = vpop.permute.xlu0 %989
    %v991 = vsel %vm163, %v990, 0
    %993 = vmatpush.msra.mxu0 0.0
    %994 = vmatpush.msra.mxu0 0.0
    %995 = vmatpush.msra.mxu0 0.0
    %996 = vmatpush.msra.mxu0 0.0
    %997 = vmatpush.msra.mxu0 0.0
    %998 = vmatpush.msra.mxu0 0.0
    %999 = vmatpush.msra.mxu0 0.0
    %1000 = vmatpush.msra.mxu0 0.0
    %1001 = vmatpush.msra.mxu0 0.0
    %1002 = vmatpush.msra.mxu0 0.0
    %1003 = vmatpush.msra.mxu0 0.0
    %1004 = vmatpush.msra.mxu0 0.0
    %1005 = vmatpush.msra.mxu0 0.0
    %1006 = vmatpush.msra.mxu0 0.0
    %1007 = vmatpush.msra.mxu0 0.0
    %1008 = vmatpush.msra.mxu0 %v248
    %1009 = vmatmul.f32.gmra.mxu0 %v991
    %v1010 = vpop.f32.mrf.mxu0
    %v1011 = vadd.f32 0.0, %v1010
    %1012 = vdwg.mxu0
    %v1013 = vadd.f32 %v988, %v1011
    %v1014 = vadd.f32 %v1013, %v272
    %v1015 = vmax.f32 %v1014, 0.0
    %1016 = vmatpush.msra.mxu0 0.0
    %1017 = vmatpush.msra.mxu0 0.0
    %1018 = vmatpush.msra.mxu0 0.0
    %1019 = vmatpush.msra.mxu0 0.0
    %1020 = vmatpush.msra.mxu0 0.0
    %1021 = vmatpush.msra.mxu0 0.0
    %1022 = vmatpush.msra.mxu0 0.0
    %1023 = vmatpush.msra.mxu0 0.0
    %1024 = vmatpush.msra.mxu0 0.0
    %1025 = vmatpush.msra.mxu0 0.0
    %1026 = vmatpush.msra.mxu0 0.0
    %1027 = vmatpush.msra.mxu0 0.0
    %1028 = vmatpush.msra.mxu0 0.0
    %1029 = vmatpush.msra.mxu0 0.0
    %1030 = vmatpush.msra.mxu0 0.0
    %1031 = vmatpush.msra.mxu0 %v168
    %1032 = vmatmul.f32.gmra.mxu0 %v351
    %v1033 = vpop.f32.mrf.mxu0
    %v1034 = vadd.f32 0.0, %v1033
    %1035 = vdwg.mxu0
    %1036 = vmatpush.msra.mxu0 0.0
    %1037 = vmatpush.msra.mxu0 0.0
    %1038 = vmatpush.msra.mxu0 0.0
    %1039 = vmatpush.msra.mxu0 0.0
    %1040 = vmatpush.msra.mxu0 0.0
    %1041 = vmatpush.msra.mxu0 0.0
    %1042 = vmatpush.msra.mxu0 0.0
    %1043 = vmatpush.msra.mxu0 0.0
    %1044 = vmatpush.msra.mxu0 0.0
    %1045 = vmatpush.msra.mxu0 0.0
    %1046 = vmatpush.msra.mxu0 0.0
    %1047 = vmatpush.msra.mxu0 0.0
    %1048 = vmatpush.msra.mxu0 0.0
    %1049 = vmatpush.msra.mxu0 0.0
    %1050 = vmatpush.msra.mxu0 0.0
    %1051 = vmatpush.msra.mxu0 %v193
    %1052 = vmatmul.f32.gmra.mxu0 %v326
    %v1053 = vpop.f32.mrf.mxu0
    %v1054 = vadd.f32 %v1034, %v1053
    %1055 = vdwg.mxu0
    %1056 = vmatpush.msra.mxu0 0.0
    %1057 = vmatpush.msra.mxu0 0.0
    %1058 = vmatpush.msra.mxu0 0.0
    %1059 = vmatpush.msra.mxu0 0.0
    %1060 = vmatpush.msra.mxu0 0.0
    %1061 = vmatpush.msra.mxu0 0.0
    %1062 = vmatpush.msra.mxu0 0.0
    %1063 = vmatpush.msra.mxu0 0.0
    %1064 = vmatpush.msra.mxu0 0.0
    %1065 = vmatpush.msra.mxu0 0.0
    %1066 = vmatpush.msra.mxu0 0.0
    %1067 = vmatpush.msra.mxu0 0.0
    %1068 = vmatpush.msra.mxu0 0.0
    %1069 = vmatpush.msra.mxu0 0.0
    %1070 = vmatpush.msra.mxu0 0.0
    %1071 = vmatpush.msra.mxu0 %v220
    %1072 = vmatmul.f32.gmra.mxu0 %v727
    %v1073 = vpop.f32.mrf.mxu0
    %v1074 = vadd.f32 0.0, %v1073
    %1075 = vdwg.mxu0
    %v1076 = vadd.f32 %v1054, %v1074
    %1077 = vrot.lane.b32.xlu0 %v33, 92
    %v1078 = vpop.permute.xlu0 %1077
    %v1079 = vsel %vm163, %v1078, 0
    %1081 = vmatpush.msra.mxu0 0.0
    %1082 = vmatpush.msra.mxu0 0.0
    %1083 = vmatpush.msra.mxu0 0.0
    %1084 = vmatpush.msra.mxu0 0.0
    %1085 = vmatpush.msra.mxu0 0.0
    %1086 = vmatpush.msra.mxu0 0.0
    %1087 = vmatpush.msra.mxu0 0.0
    %1088 = vmatpush.msra.mxu0 0.0
    %1089 = vmatpush.msra.mxu0 0.0
    %1090 = vmatpush.msra.mxu0 0.0
    %1091 = vmatpush.msra.mxu0 0.0
    %1092 = vmatpush.msra.mxu0 0.0
    %1093 = vmatpush.msra.mxu0 0.0
    %1094 = vmatpush.msra.mxu0 0.0
    %1095 = vmatpush.msra.mxu0 0.0
    %1096 = vmatpush.msra.mxu0 %v248
    %1097 = vmatmul.f32.gmra.mxu0 %v1079
    %v1098 = vpop.f32.mrf.mxu0
    %v1099 = vadd.f32 0.0, %v1098
    %1100 = vdwg.mxu0
    %v1101 = vadd.f32 %v1076, %v1099
    %v1102 = vadd.f32 %v1101, %v272
    %v1103 = vmax.f32 %v1102, 0.0
    %1104 = vmatpush.msra.mxu0 0.0
    %1105 = vmatpush.msra.mxu0 0.0
    %1106 = vmatpush.msra.mxu0 0.0
    %1107 = vmatpush.msra.mxu0 0.0
    %1108 = vmatpush.msra.mxu0 0.0
    %1109 = vmatpush.msra.mxu0 0.0
    %1110 = vmatpush.msra.mxu0 0.0
    %1111 = vmatpush.msra.mxu0 0.0
    %1112 = vmatpush.msra.mxu0 0.0
    %1113 = vmatpush.msra.mxu0 0.0
    %1114 = vmatpush.msra.mxu0 0.0
    %1115 = vmatpush.msra.mxu0 0.0
    %1116 = vmatpush.msra.mxu0 0.0
    %1117 = vmatpush.msra.mxu0 0.0
    %1118 = vmatpush.msra.mxu0 0.0
    %1119 = vmatpush.msra.mxu0 %v168
    %1120 = vmatmul.f32.gmra.mxu0 %v451
    %v1121 = vpop.f32.mrf.mxu0
    %v1122 = vadd.f32 0.0, %v1121
    %1123 = vdwg.mxu0
    %1124 = vmatpush.msra.mxu0 0.0
    %1125 = vmatpush.msra.mxu0 0.0
    %1126 = vmatpush.msra.mxu0 0.0
    %1127 = vmatpush.msra.mxu0 0.0
    %1128 = vmatpush.msra.mxu0 0.0
    %1129 = vmatpush.msra.mxu0 0.0
    %1130 = vmatpush.msra.mxu0 0.0
    %1131 = vmatpush.msra.mxu0 0.0
    %1132 = vmatpush.msra.mxu0 0.0
    %1133 = vmatpush.msra.mxu0 0.0
    %1134 = vmatpush.msra.mxu0 0.0
    %1135 = vmatpush.msra.mxu0 0.0
    %1136 = vmatpush.msra.mxu0 0.0
    %1137 = vmatpush.msra.mxu0 0.0
    %1138 = vmatpush.msra.mxu0 0.0
    %1139 = vmatpush.msra.mxu0 %v193
    %1140 = vmatmul.f32.gmra.mxu0 %v426
    %v1141 = vpop.f32.mrf.mxu0
    %v1142 = vadd.f32 %v1122, %v1141
    %1143 = vdwg.mxu0
    %1144 = vmatpush.msra.mxu0 0.0
    %1145 = vmatpush.msra.mxu0 0.0
    %1146 = vmatpush.msra.mxu0 0.0
    %1147 = vmatpush.msra.mxu0 0.0
    %1148 = vmatpush.msra.mxu0 0.0
    %1149 = vmatpush.msra.mxu0 0.0
    %1150 = vmatpush.msra.mxu0 0.0
    %1151 = vmatpush.msra.mxu0 0.0
    %1152 = vmatpush.msra.mxu0 0.0
    %1153 = vmatpush.msra.mxu0 0.0
    %1154 = vmatpush.msra.mxu0 0.0
    %1155 = vmatpush.msra.mxu0 0.0
    %1156 = vmatpush.msra.mxu0 0.0
    %1157 = vmatpush.msra.mxu0 0.0
    %1158 = vmatpush.msra.mxu0 0.0
    %1159 = vmatpush.msra.mxu0 %v220
    %1160 = vmatmul.f32.gmra.mxu0 %v815
    %v1161 = vpop.f32.mrf.mxu0
    %v1162 = vadd.f32 0.0, %v1161
    %1163 = vdwg.mxu0
    %v1164 = vadd.f32 %v1142, %v1162
    %1165 = vrot.lane.b32.xlu0 %v33, 91
    %v1166 = vpop.permute.xlu0 %1165
    %v1167 = vsel %vm163, %v1166, 0
    %1169 = vmatpush.msra.mxu0 0.0
    %1170 = vmatpush.msra.mxu0 0.0
    %1171 = vmatpush.msra.mxu0 0.0
    %1172 = vmatpush.msra.mxu0 0.0
    %1173 = vmatpush.msra.mxu0 0.0
    %1174 = vmatpush.msra.mxu0 0.0
    %1175 = vmatpush.msra.mxu0 0.0
    %1176 = vmatpush.msra.mxu0 0.0
    %1177 = vmatpush.msra.mxu0 0.0
    %1178 = vmatpush.msra.mxu0 0.0
    %1179 = vmatpush.msra.mxu0 0.0
    %1180 = vmatpush.msra.mxu0 0.0
    %1181 = vmatpush.msra.mxu0 0.0
    %1182 = vmatpush.msra.mxu0 0.0
    %1183 = vmatpush.msra.mxu0 0.0
    %1184 = vmatpush.msra.mxu0 %v248
    %1185 = vmatmul.f32.gmra.mxu0 %v1167
    %v1186 = vpop.f32.mrf.mxu0
    %v1187 = vadd.f32 0.0, %v1186
    %1188 = vdwg.mxu0
    %v1189 = vadd.f32 %v1164, %v1187
    %v1190 = vadd.f32 %v1189, %v272
    %v1191 = vmax.f32 %v1190, 0.0
    %1192 = vmatpush.msra.mxu0 0.0
    %1193 = vmatpush.msra.mxu0 0.0
    %1194 = vmatpush.msra.mxu0 0.0
    %1195 = vmatpush.msra.mxu0 0.0
    %1196 = vmatpush.msra.mxu0 0.0
    %1197 = vmatpush.msra.mxu0 0.0
    %1198 = vmatpush.msra.mxu0 0.0
    %1199 = vmatpush.msra.mxu0 0.0
    %1200 = vmatpush.msra.mxu0 0.0
    %1201 = vmatpush.msra.mxu0 0.0
    %1202 = vmatpush.msra.mxu0 0.0
    %1203 = vmatpush.msra.mxu0 0.0
    %1204 = vmatpush.msra.mxu0 0.0
    %1205 = vmatpush.msra.mxu0 0.0
    %1206 = vmatpush.msra.mxu0 0.0
    %1207 = vmatpush.msra.mxu0 %v168
    %1208 = vmatmul.f32.gmra.mxu0 %v551
    %v1209 = vpop.f32.mrf.mxu0
    %v1210 = vadd.f32 0.0, %v1209
    %1211 = vdwg.mxu0
    %1212 = vmatpush.msra.mxu0 0.0
    %1213 = vmatpush.msra.mxu0 0.0
    %1214 = vmatpush.msra.mxu0 0.0
    %1215 = vmatpush.msra.mxu0 0.0
    %1216 = vmatpush.msra.mxu0 0.0
    %1217 = vmatpush.msra.mxu0 0.0
    %1218 = vmatpush.msra.mxu0 0.0
    %1219 = vmatpush.msra.mxu0 0.0
    %1220 = vmatpush.msra.mxu0 0.0
    %1221 = vmatpush.msra.mxu0 0.0
    %1222 = vmatpush.msra.mxu0 0.0
    %1223 = vmatpush.msra.mxu0 0.0
    %1224 = vmatpush.msra.mxu0 0.0
    %1225 = vmatpush.msra.mxu0 0.0
    %1226 = vmatpush.msra.mxu0 0.0
    %1227 = vmatpush.msra.mxu0 %v193
    %1228 = vmatmul.f32.gmra.mxu0 %v526
    %v1229 = vpop.f32.mrf.mxu0
    %v1230 = vadd.f32 %v1210, %v1229
    %1231 = vdwg.mxu0
    %1232 = vmatpush.msra.mxu0 0.0
    %1233 = vmatpush.msra.mxu0 0.0
    %1234 = vmatpush.msra.mxu0 0.0
    %1235 = vmatpush.msra.mxu0 0.0
    %1236 = vmatpush.msra.mxu0 0.0
    %1237 = vmatpush.msra.mxu0 0.0
    %1238 = vmatpush.msra.mxu0 0.0
    %1239 = vmatpush.msra.mxu0 0.0
    %1240 = vmatpush.msra.mxu0 0.0
    %1241 = vmatpush.msra.mxu0 0.0
    %1242 = vmatpush.msra.mxu0 0.0
    %1243 = vmatpush.msra.mxu0 0.0
    %1244 = vmatpush.msra.mxu0 0.0
    %1245 = vmatpush.msra.mxu0 0.0
    %1246 = vmatpush.msra.mxu0 0.0
    %1247 = vmatpush.msra.mxu0 %v220
    %1248 = vmatmul.f32.gmra.mxu0 %v903
    %v1249 = vpop.f32.mrf.mxu0
    %v1250 = vadd.f32 0.0, %v1249
    %1251 = vdwg.mxu0
    %v1252 = vadd.f32 %v1230, %v1250
    %1253 = vrot.lane.b32.xlu0 %v33, 90
    %v1254 = vpop.permute.xlu0 %1253
    %v1255 = vsel %vm163, %v1254, 0
    %1257 = vmatpush.msra.mxu0 0.0
    %1258 = vmatpush.msra.mxu0 0.0
    %1259 = vmatpush.msra.mxu0 0.0
    %1260 = vmatpush.msra.mxu0 0.0
    %1261 = vmatpush.msra.mxu0 0.0
    %1262 = vmatpush.msra.mxu0 0.0
    %1263 = vmatpush.msra.mxu0 0.0
    %1264 = vmatpush.msra.mxu0 0.0
    %1265 = vmatpush.msra.mxu0 0.0
    %1266 = vmatpush.msra.mxu0 0.0
    %1267 = vmatpush.msra.mxu0 0.0
    %1268 = vmatpush.msra.mxu0 0.0
    %1269 = vmatpush.msra.mxu0 0.0
    %1270 = vmatpush.msra.mxu0 0.0
    %1271 = vmatpush.msra.mxu0 0.0
    %1272 = vmatpush.msra.mxu0 %v248
    %1273 = vmatmul.f32.gmra.mxu0 %v1255
    %v1274 = vpop.f32.mrf.mxu0
    %v1275 = vadd.f32 0.0, %v1274
    %1276 = vdwg.mxu0
    %v1277 = vadd.f32 %v1252, %v1275
    %v1278 = vadd.f32 %v1277, %v272
    %v1279 = vmax.f32 %v1278, 0.0
    %1280 = vmatpush.msra.mxu0 %v72
    %1281 = vmatpush.msra.mxu0 %v71
    %1282 = vmatpush.msra.mxu0 %v70
    %1283 = vmatpush.msra.mxu0 %v69
    %1284 = vmatpush.msra.mxu0 %v68
    %1285 = vmatpush.msra.mxu0 %v67
    %1286 = vmatpush.msra.mxu0 %v66
    %1287 = vmatpush.msra.mxu0 %v65
    %1288 = vmatpush.msra.mxu0 %v64
    %1289 = vmatpush.msra.mxu0 %v63
    %1290 = vmatpush.msra.mxu0 %v62
    %1291 = vmatpush.msra.mxu0 %v61
    %1292 = vmatpush.msra.mxu0 %v60
    %1293 = vmatpush.msra.mxu0 %v59
    %1294 = vmatpush.msra.mxu0 %v58
    %1295 = vmatpush.msra.mxu0 %v57
    %1296 = vmatmul.f32.gmra.mxu0 %v375
    %v1297 = vpop.f32.mrf.mxu0
    %v1298 = vadd.f32 0.0, %v1297
    %1299 = vdwg.mxu0
    %1300 = vmatpush.msra.mxu0 %v55
    %1301 = vmatpush.msra.mxu0 %v54
    %1302 = vmatpush.msra.mxu0 %v53
    %1303 = vmatpush.msra.mxu0 %v52
    %1304 = vmatpush.msra.mxu0 %v51
    %1305 = vmatpush.msra.mxu0 %v50
    %1306 = vmatpush.msra.mxu0 %v49
    %1307 = vmatpush.msra.mxu0 %v48
    %1308 = vmatpush.msra.mxu0 %v47
    %1309 = vmatpush.msra.mxu0 %v46
    %1310 = vmatpush.msra.mxu0 %v45
    %1311 = vmatpush.msra.mxu0 %v44
    %1312 = vmatpush.msra.mxu0 %v43
    %1313 = vmatpush.msra.mxu0 %v42
    %1314 = vmatpush.msra.mxu0 %v41
    %1315 = vmatpush.msra.mxu0 %v40
    %1316 = vmatmul.f32.gmra.mxu0 %v275
    %v1317 = vpop.f32.mrf.mxu0
    %v1318 = vadd.f32 %v1298, %v1317
    %1319 = vdwg.mxu0
    %1320 = vmatpush.msra.mxu0 %v89
    %1321 = vmatpush.msra.mxu0 %v88
    %1322 = vmatpush.msra.mxu0 %v87
    %1323 = vmatpush.msra.mxu0 %v86
    %1324 = vmatpush.msra.mxu0 %v85
    %1325 = vmatpush.msra.mxu0 %v84
    %1326 = vmatpush.msra.mxu0 %v83
    %1327 = vmatpush.msra.mxu0 %v82
    %1328 = vmatpush.msra.mxu0 %v81
    %1329 = vmatpush.msra.mxu0 %v80
    %1330 = vmatpush.msra.mxu0 %v79
    %1331 = vmatpush.msra.mxu0 %v78
    %1332 = vmatpush.msra.mxu0 %v77
    %1333 = vmatpush.msra.mxu0 %v76
    %1334 = vmatpush.msra.mxu0 %v75
    %1335 = vmatpush.msra.mxu0 %v74
    %1336 = vmatmul.f32.gmra.mxu0 %v663
    %v1337 = vpop.f32.mrf.mxu0
    %v1338 = vadd.f32 0.0, %v1337
    %1339 = vdwg.mxu0
    %v1340 = vadd.f32 %v1318, %v1338
    %1341 = vmatpush.msra.mxu0 %v106
    %1342 = vmatpush.msra.mxu0 %v105
    %1343 = vmatpush.msra.mxu0 %v104
    %1344 = vmatpush.msra.mxu0 %v103
    %1345 = vmatpush.msra.mxu0 %v102
    %1346 = vmatpush.msra.mxu0 %v101
    %1347 = vmatpush.msra.mxu0 %v100
    %1348 = vmatpush.msra.mxu0 %v99
    %1349 = vmatpush.msra.mxu0 %v98
    %1350 = vmatpush.msra.mxu0 %v97
    %1351 = vmatpush.msra.mxu0 %v96
    %1352 = vmatpush.msra.mxu0 %v95
    %1353 = vmatpush.msra.mxu0 %v94
    %1354 = vmatpush.msra.mxu0 %v93
    %1355 = vmatpush.msra.mxu0 %v92
    %1356 = vmatpush.msra.mxu0 %v91
    %1357 = vmatmul.f32.gmra.mxu0 %v751
    %v1358 = vpop.f32.mrf.mxu0
    %v1359 = vadd.f32 0.0, %v1358
    %1360 = vdwg.mxu0
    %v1361 = vadd.f32 %v1340, %v1359
    %v1363 = vperm.slane %v35, 0
    %v1365 = vadd.f32 %v1361, %v1363
    %v1366 = vmax.f32 %v1365, 0.0
    %1367 = vmatpush.msra.mxu0 %v72
    %1368 = vmatpush.msra.mxu0 %v71
    %1369 = vmatpush.msra.mxu0 %v70
    %1370 = vmatpush.msra.mxu0 %v69
    %1371 = vmatpush.msra.mxu0 %v68
    %1372 = vmatpush.msra.mxu0 %v67
    %1373 = vmatpush.msra.mxu0 %v66
    %1374 = vmatpush.msra.mxu0 %v65
    %1375 = vmatpush.msra.mxu0 %v64
    %1376 = vmatpush.msra.mxu0 %v63
    %1377 = vmatpush.msra.mxu0 %v62
    %1378 = vmatpush.msra.mxu0 %v61
    %1379 = vmatpush.msra.mxu0 %v60
    %1380 = vmatpush.msra.mxu0 %v59
    %1381 = vmatpush.msra.mxu0 %v58
    %1382 = vmatpush.msra.mxu0 %v57
    %1383 = vmatmul.f32.gmra.mxu0 %v475
    %v1384 = vpop.f32.mrf.mxu0
    %v1385 = vadd.f32 0.0, %v1384
    %1386 = vdwg.mxu0
    %1387 = vmatpush.msra.mxu0 %v55
    %1388 = vmatpush.msra.mxu0 %v54
    %1389 = vmatpush.msra.mxu0 %v53
    %1390 = vmatpush.msra.mxu0 %v52
    %1391 = vmatpush.msra.mxu0 %v51
    %1392 = vmatpush.msra.mxu0 %v50
    %1393 = vmatpush.msra.mxu0 %v49
    %1394 = vmatpush.msra.mxu0 %v48
    %1395 = vmatpush.msra.mxu0 %v47
    %1396 = vmatpush.msra.mxu0 %v46
    %1397 = vmatpush.msra.mxu0 %v45
    %1398 = vmatpush.msra.mxu0 %v44
    %1399 = vmatpush.msra.mxu0 %v43
    %1400 = vmatpush.msra.mxu0 %v42
    %1401 = vmatpush.msra.mxu0 %v41
    %1402 = vmatpush.msra.mxu0 %v40
    %1403 = vmatmul.f32.gmra.mxu0 %v375
    %v1404 = vpop.f32.mrf.mxu0
    %v1405 = vadd.f32 %v1385, %v1404
    %1406 = vdwg.mxu0
    %1407 = vmatpush.msra.mxu0 %v89
    %1408 = vmatpush.msra.mxu0 %v88
    %1409 = vmatpush.msra.mxu0 %v87
    %1410 = vmatpush.msra.mxu0 %v86
    %1411 = vmatpush.msra.mxu0 %v85
    %1412 = vmatpush.msra.mxu0 %v84
    %1413 = vmatpush.msra.mxu0 %v83
    %1414 = vmatpush.msra.mxu0 %v82
    %1415 = vmatpush.msra.mxu0 %v81
    %1416 = vmatpush.msra.mxu0 %v80
    %1417 = vmatpush.msra.mxu0 %v79
    %1418 = vmatpush.msra.mxu0 %v78
    %1419 = vmatpush.msra.mxu0 %v77
    %1420 = vmatpush.msra.mxu0 %v76
    %1421 = vmatpush.msra.mxu0 %v75
    %1422 = vmatpush.msra.mxu0 %v74
    %1423 = vmatmul.f32.gmra.mxu0 %v751
    %v1424 = vpop.f32.mrf.mxu0
    %v1425 = vadd.f32 0.0, %v1424
    %1426 = vdwg.mxu0
    %v1427 = vadd.f32 %v1405, %v1425
    %1428 = vmatpush.msra.mxu0 %v106
    %1429 = vmatpush.msra.mxu0 %v105
    %1430 = vmatpush.msra.mxu0 %v104
    %1431 = vmatpush.msra.mxu0 %v103
    %1432 = vmatpush.msra.mxu0 %v102
    %1433 = vmatpush.msra.mxu0 %v101
    %1434 = vmatpush.msra.mxu0 %v100
    %1435 = vmatpush.msra.mxu0 %v99
    %1436 = vmatpush.msra.mxu0 %v98
    %1437 = vmatpush.msra.mxu0 %v97
    %1438 = vmatpush.msra.mxu0 %v96
    %1439 = vmatpush.msra.mxu0 %v95
    %1440 = vmatpush.msra.mxu0 %v94
    %1441 = vmatpush.msra.mxu0 %v93
    %1442 = vmatpush.msra.mxu0 %v92
    %1443 = vmatpush.msra.mxu0 %v91
    %1444 = vmatmul.f32.gmra.mxu0 %v839
    %v1445 = vpop.f32.mrf.mxu0
    %v1446 = vadd.f32 0.0, %v1445
    %1447 = vdwg.mxu0
    %v1448 = vadd.f32 %v1427, %v1446
    %v1449 = vadd.f32 %v1448, %v1363
    %v1450 = vmax.f32 %v1449, 0.0
    %vm1451 = vcmask 523264
    %v1453 = vsel %vm1451, %v1450, 0
    %1455 = vmatpush.msra.mxu0 0.0
    %1456 = vmatpush.msra.mxu0 0.0
    %1457 = vmatpush.msra.mxu0 0.0
    %1458 = vmatpush.msra.mxu0 0.0
    %1459 = vmatpush.msra.mxu0 0.0
    %1460 = vmatpush.msra.mxu0 0.0
    %1461 = vmatpush.msra.mxu0 0.0
    %1462 = vmatpush.msra.mxu0 0.0
    %1463 = vmatpush.msra.mxu0 %v123
    %1464 = vmatpush.msra.mxu0 %v122
    %1465 = vmatpush.msra.mxu0 %v121
    %1466 = vmatpush.msra.mxu0 %v120
    %1467 = vmatpush.msra.mxu0 %v119
    %1468 = vmatpush.msra.mxu0 %v118
    %1469 = vmatpush.msra.mxu0 %v117
    %1470 = vmatpush.msra.mxu0 %v116
    %1471 = vmatmul.f32.gmra.mxu0 %v1453
    %v1472 = vpop.f32.mrf.mxu0
    %v1473 = vadd.f32 0.0, %v1472
    %1474 = vdwg.mxu0
    %v1476 = vsel %vm1451, %v1366, 0
    %1478 = vmatpush.msra.mxu0 0.0
    %1479 = vmatpush.msra.mxu0 0.0
    %1480 = vmatpush.msra.mxu0 0.0
    %1481 = vmatpush.msra.mxu0 0.0
    %1482 = vmatpush.msra.mxu0 0.0
    %1483 = vmatpush.msra.mxu0 0.0
    %1484 = vmatpush.msra.mxu0 0.0
    %1485 = vmatpush.msra.mxu0 0.0
    %1486 = vmatpush.msra.mxu0 %v114
    %1487 = vmatpush.msra.mxu0 %v113
    %1488 = vmatpush.msra.mxu0 %v112
    %1489 = vmatpush.msra.mxu0 %v111
    %1490 = vmatpush.msra.mxu0 %v110
    %1491 = vmatpush.msra.mxu0 %v109
    %1492 = vmatpush.msra.mxu0 %v108
    %1493 = vmatpush.msra.mxu0 %v107
    %1494 = vmatmul.f32.gmra.mxu0 %v1476
    %v1495 = vpop.f32.mrf.mxu0
    %v1496 = vadd.f32 %v1473, %v1495
    %1497 = vdwg.mxu0
    %1498 = vmatpush.msra.mxu0 %v72
    %1499 = vmatpush.msra.mxu0 %v71
    %1500 = vmatpush.msra.mxu0 %v70
    %1501 = vmatpush.msra.mxu0 %v69
    %1502 = vmatpush.msra.mxu0 %v68
    %1503 = vmatpush.msra.mxu0 %v67
    %1504 = vmatpush.msra.mxu0 %v66
    %1505 = vmatpush.msra.mxu0 %v65
    %1506 = vmatpush.msra.mxu0 %v64
    %1507 = vmatpush.msra.mxu0 %v63
    %1508 = vmatpush.msra.mxu0 %v62
    %1509 = vmatpush.msra.mxu0 %v61
    %1510 = vmatpush.msra.mxu0 %v60
    %1511 = vmatpush.msra.mxu0 %v59
    %1512 = vmatpush.msra.mxu0 %v58
    %1513 = vmatpush.msra.mxu0 %v57
    %1514 = vmatmul.f32.gmra.mxu0 %v575
    %v1515 = vpop.f32.mrf.mxu0
    %v1516 = vadd.f32 0.0, %v1515
    %1517 = vdwg.mxu0
    %1518 = vmatpush.msra.mxu0 %v55
    %1519 = vmatpush.msra.mxu0 %v54
    %1520 = vmatpush.msra.mxu0 %v53
    %1521 = vmatpush.msra.mxu0 %v52
    %1522 = vmatpush.msra.mxu0 %v51
    %1523 = vmatpush.msra.mxu0 %v50
    %1524 = vmatpush.msra.mxu0 %v49
    %1525 = vmatpush.msra.mxu0 %v48
    %1526 = vmatpush.msra.mxu0 %v47
    %1527 = vmatpush.msra.mxu0 %v46
    %1528 = vmatpush.msra.mxu0 %v45
    %1529 = vmatpush.msra.mxu0 %v44
    %1530 = vmatpush.msra.mxu0 %v43
    %1531 = vmatpush.msra.mxu0 %v42
    %1532 = vmatpush.msra.mxu0 %v41
    %1533 = vmatpush.msra.mxu0 %v40
    %1534 = vmatmul.f32.gmra.mxu0 %v475
    %v1535 = vpop.f32.mrf.mxu0
    %v1536 = vadd.f32 %v1516, %v1535
    %1537 = vdwg.mxu0
    %1538 = vmatpush.msra.mxu0 %v89
    %1539 = vmatpush.msra.mxu0 %v88
    %1540 = vmatpush.msra.mxu0 %v87
    %1541 = vmatpush.msra.mxu0 %v86
    %1542 = vmatpush.msra.mxu0 %v85
    %1543 = vmatpush.msra.mxu0 %v84
    %1544 = vmatpush.msra.mxu0 %v83
    %1545 = vmatpush.msra.mxu0 %v82
    %1546 = vmatpush.msra.mxu0 %v81
    %1547 = vmatpush.msra.mxu0 %v80
    %1548 = vmatpush.msra.mxu0 %v79
    %1549 = vmatpush.msra.mxu0 %v78
    %1550 = vmatpush.msra.mxu0 %v77
    %1551 = vmatpush.msra.mxu0 %v76
    %1552 = vmatpush.msra.mxu0 %v75
    %1553 = vmatpush.msra.mxu0 %v74
    %1554 = vmatmul.f32.gmra.mxu0 %v839
    %v1555 = vpop.f32.mrf.mxu0
    %v1556 = vadd.f32 0.0, %v1555
    %1557 = vdwg.mxu0
    %v1558 = vadd.f32 %v1536, %v1556
    %1559 = vmatpush.msra.mxu0 %v106
    %1560 = vmatpush.msra.mxu0 %v105
    %1561 = vmatpush.msra.mxu0 %v104
    %1562 = vmatpush.msra.mxu0 %v103
    %1563 = vmatpush.msra.mxu0 %v102
    %1564 = vmatpush.msra.mxu0 %v101
    %1565 = vmatpush.msra.mxu0 %v100
    %1566 = vmatpush.msra.mxu0 %v99
    %1567 = vmatpush.msra.mxu0 %v98
    %1568 = vmatpush.msra.mxu0 %v97
    %1569 = vmatpush.msra.mxu0 %v96
    %1570 = vmatpush.msra.mxu0 %v95
    %1571 = vmatpush.msra.mxu0 %v94
    %1572 = vmatpush.msra.mxu0 %v93
    %1573 = vmatpush.msra.mxu0 %v92
    %1574 = vmatpush.msra.mxu0 %v91
    %1575 = vmatmul.f32.gmra.mxu0 %v927
    %v1576 = vpop.f32.mrf.mxu0
    %v1577 = vadd.f32 0.0, %v1576
    %1578 = vdwg.mxu0
    %v1579 = vadd.f32 %v1558, %v1577
    %v1580 = vadd.f32 %v1579, %v1363
    %v1581 = vmax.f32 %v1580, 0.0
    %v1583 = vsel %vm1451, %v1581, 0
    %1585 = vmatpush.msra.mxu0 0.0
    %1586 = vmatpush.msra.mxu0 0.0
    %1587 = vmatpush.msra.mxu0 0.0
    %1588 = vmatpush.msra.mxu0 0.0
    %1589 = vmatpush.msra.mxu0 0.0
    %1590 = vmatpush.msra.mxu0 0.0
    %1591 = vmatpush.msra.mxu0 0.0
    %1592 = vmatpush.msra.mxu0 0.0
    %1593 = vmatpush.msra.mxu0 %v132
    %1594 = vmatpush.msra.mxu0 %v131
    %1595 = vmatpush.msra.mxu0 %v130
    %1596 = vmatpush.msra.mxu0 %v129
    %1597 = vmatpush.msra.mxu0 %v128
    %1598 = vmatpush.msra.mxu0 %v127
    %1599 = vmatpush.msra.mxu0 %v126
    %1600 = vmatpush.msra.mxu0 %v125
    %1601 = vmatmul.f32.gmra.mxu0 %v1583
    %v1602 = vpop.f32.mrf.mxu0
    %v1603 = vadd.f32 0.0, %v1602
    %1604 = vdwg.mxu0
    %v1605 = vadd.f32 %v1496, %v1603
    %1606 = vmatpush.msra.mxu0 %v72
    %1607 = vmatpush.msra.mxu0 %v71
    %1608 = vmatpush.msra.mxu0 %v70
    %1609 = vmatpush.msra.mxu0 %v69
    %1610 = vmatpush.msra.mxu0 %v68
    %1611 = vmatpush.msra.mxu0 %v67
    %1612 = vmatpush.msra.mxu0 %v66
    %1613 = vmatpush.msra.mxu0 %v65
    %1614 = vmatpush.msra.mxu0 %v64
    %1615 = vmatpush.msra.mxu0 %v63
    %1616 = vmatpush.msra.mxu0 %v62
    %1617 = vmatpush.msra.mxu0 %v61
    %1618 = vmatpush.msra.mxu0 %v60
    %1619 = vmatpush.msra.mxu0 %v59
    %1620 = vmatpush.msra.mxu0 %v58
    %1621 = vmatpush.msra.mxu0 %v57
    %1622 = vmatmul.f32.gmra.mxu0 %v751
    %v1623 = vpop.f32.mrf.mxu0
    %v1624 = vadd.f32 0.0, %v1623
    %1625 = vdwg.mxu0
    %1626 = vmatpush.msra.mxu0 %v55
    %1627 = vmatpush.msra.mxu0 %v54
    %1628 = vmatpush.msra.mxu0 %v53
    %1629 = vmatpush.msra.mxu0 %v52
    %1630 = vmatpush.msra.mxu0 %v51
    %1631 = vmatpush.msra.mxu0 %v50
    %1632 = vmatpush.msra.mxu0 %v49
    %1633 = vmatpush.msra.mxu0 %v48
    %1634 = vmatpush.msra.mxu0 %v47
    %1635 = vmatpush.msra.mxu0 %v46
    %1636 = vmatpush.msra.mxu0 %v45
    %1637 = vmatpush.msra.mxu0 %v44
    %1638 = vmatpush.msra.mxu0 %v43
    %1639 = vmatpush.msra.mxu0 %v42
    %1640 = vmatpush.msra.mxu0 %v41
    %1641 = vmatpush.msra.mxu0 %v40
    %1642 = vmatmul.f32.gmra.mxu0 %v663
    %v1643 = vpop.f32.mrf.mxu0
    %v1644 = vadd.f32 %v1624, %v1643
    %1645 = vdwg.mxu0
    %1646 = vmatpush.msra.mxu0 %v89
    %1647 = vmatpush.msra.mxu0 %v88
    %1648 = vmatpush.msra.mxu0 %v87
    %1649 = vmatpush.msra.mxu0 %v86
    %1650 = vmatpush.msra.mxu0 %v85
    %1651 = vmatpush.msra.mxu0 %v84
    %1652 = vmatpush.msra.mxu0 %v83
    %1653 = vmatpush.msra.mxu0 %v82
    %1654 = vmatpush.msra.mxu0 %v81
    %1655 = vmatpush.msra.mxu0 %v80
    %1656 = vmatpush.msra.mxu0 %v79
    %1657 = vmatpush.msra.mxu0 %v78
    %1658 = vmatpush.msra.mxu0 %v77
    %1659 = vmatpush.msra.mxu0 %v76
    %1660 = vmatpush.msra.mxu0 %v75
    %1661 = vmatpush.msra.mxu0 %v74
    %1662 = vmatmul.f32.gmra.mxu0 %v1015
    %v1663 = vpop.f32.mrf.mxu0
    %v1664 = vadd.f32 0.0, %v1663
    %1665 = vdwg.mxu0
    %v1666 = vadd.f32 %v1644, %v1664
    %1667 = vmatpush.msra.mxu0 %v106
    %1668 = vmatpush.msra.mxu0 %v105
    %1669 = vmatpush.msra.mxu0 %v104
    %1670 = vmatpush.msra.mxu0 %v103
    %1671 = vmatpush.msra.mxu0 %v102
    %1672 = vmatpush.msra.mxu0 %v101
    %1673 = vmatpush.msra.mxu0 %v100
    %1674 = vmatpush.msra.mxu0 %v99
    %1675 = vmatpush.msra.mxu0 %v98
    %1676 = vmatpush.msra.mxu0 %v97
    %1677 = vmatpush.msra.mxu0 %v96
    %1678 = vmatpush.msra.mxu0 %v95
    %1679 = vmatpush.msra.mxu0 %v94
    %1680 = vmatpush.msra.mxu0 %v93
    %1681 = vmatpush.msra.mxu0 %v92
    %1682 = vmatpush.msra.mxu0 %v91
    %1683 = vmatmul.f32.gmra.mxu0 %v1103
    %v1684 = vpop.f32.mrf.mxu0
    %v1685 = vadd.f32 0.0, %v1684
    %1686 = vdwg.mxu0
    %v1687 = vadd.f32 %v1666, %v1685
    %v1688 = vadd.f32 %v1687, %v1363
    %v1689 = vmax.f32 %v1688, 0.0
    %v1691 = vsel %vm1451, %v1689, 0
    %1693 = vmatpush.msra.mxu0 0.0
    %1694 = vmatpush.msra.mxu0 0.0
    %1695 = vmatpush.msra.mxu0 0.0
    %1696 = vmatpush.msra.mxu0 0.0
    %1697 = vmatpush.msra.mxu0 0.0
    %1698 = vmatpush.msra.mxu0 0.0
    %1699 = vmatpush.msra.mxu0 0.0
    %1700 = vmatpush.msra.mxu0 0.0
    %1701 = vmatpush.msra.mxu0 %v141
    %1702 = vmatpush.msra.mxu0 %v140
    %1703 = vmatpush.msra.mxu0 %v139
    %1704 = vmatpush.msra.mxu0 %v138
    %1705 = vmatpush.msra.mxu0 %v137
    %1706 = vmatpush.msra.mxu0 %v136
    %1707 = vmatpush.msra.mxu0 %v135
    %1708 = vmatpush.msra.mxu0 %v134
    %1709 = vmatmul.f32.gmra.mxu0 %v1691
    %v1710 = vpop.f32.mrf.mxu0
    %v1711 = vadd.f32 0.0, %v1710
    %1712 = vdwg.mxu0
    %v1713 = vadd.f32 %v1605, %v1711
    %1714 = vmatpush.msra.mxu0 %v72
    %1715 = vmatpush.msra.mxu0 %v71
    %1716 = vmatpush.msra.mxu0 %v70
    %1717 = vmatpush.msra.mxu0 %v69
    %1718 = vmatpush.msra.mxu0 %v68
    %1719 = vmatpush.msra.mxu0 %v67
    %1720 = vmatpush.msra.mxu0 %v66
    %1721 = vmatpush.msra.mxu0 %v65
    %1722 = vmatpush.msra.mxu0 %v64
    %1723 = vmatpush.msra.mxu0 %v63
    %1724 = vmatpush.msra.mxu0 %v62
    %1725 = vmatpush.msra.mxu0 %v61
    %1726 = vmatpush.msra.mxu0 %v60
    %1727 = vmatpush.msra.mxu0 %v59
    %1728 = vmatpush.msra.mxu0 %v58
    %1729 = vmatpush.msra.mxu0 %v57
    %1730 = vmatmul.f32.gmra.mxu0 %v839
    %v1731 = vpop.f32.mrf.mxu0
    %v1732 = vadd.f32 0.0, %v1731
    %1733 = vdwg.mxu0
    %1734 = vmatpush.msra.mxu0 %v55
    %1735 = vmatpush.msra.mxu0 %v54
    %1736 = vmatpush.msra.mxu0 %v53
    %1737 = vmatpush.msra.mxu0 %v52
    %1738 = vmatpush.msra.mxu0 %v51
    %1739 = vmatpush.msra.mxu0 %v50
    %1740 = vmatpush.msra.mxu0 %v49
    %1741 = vmatpush.msra.mxu0 %v48
    %1742 = vmatpush.msra.mxu0 %v47
    %1743 = vmatpush.msra.mxu0 %v46
    %1744 = vmatpush.msra.mxu0 %v45
    %1745 = vmatpush.msra.mxu0 %v44
    %1746 = vmatpush.msra.mxu0 %v43
    %1747 = vmatpush.msra.mxu0 %v42
    %1748 = vmatpush.msra.mxu0 %v41
    %1749 = vmatpush.msra.mxu0 %v40
    %1750 = vmatmul.f32.gmra.mxu0 %v751
    %v1751 = vpop.f32.mrf.mxu0
    %v1752 = vadd.f32 %v1732, %v1751
    %1753 = vdwg.mxu0
    %1754 = vmatpush.msra.mxu0 %v89
    %1755 = vmatpush.msra.mxu0 %v88
    %1756 = vmatpush.msra.mxu0 %v87
    %1757 = vmatpush.msra.mxu0 %v86
    %1758 = vmatpush.msra.mxu0 %v85
    %1759 = vmatpush.msra.mxu0 %v84
    %1760 = vmatpush.msra.mxu0 %v83
    %1761 = vmatpush.msra.mxu0 %v82
    %1762 = vmatpush.msra.mxu0 %v81
    %1763 = vmatpush.msra.mxu0 %v80
    %1764 = vmatpush.msra.mxu0 %v79
    %1765 = vmatpush.msra.mxu0 %v78
    %1766 = vmatpush.msra.mxu0 %v77
    %1767 = vmatpush.msra.mxu0 %v76
    %1768 = vmatpush.msra.mxu0 %v75
    %1769 = vmatpush.msra.mxu0 %v74
    %1770 = vmatmul.f32.gmra.mxu0 %v1103
    %v1771 = vpop.f32.mrf.mxu0
    %v1772 = vadd.f32 0.0, %v1771
    %1773 = vdwg.mxu0
    %v1774 = vadd.f32 %v1752, %v1772
    %1775 = vmatpush.msra.mxu0 %v106
    %1776 = vmatpush.msra.mxu0 %v105
    %1777 = vmatpush.msra.mxu0 %v104
    %1778 = vmatpush.msra.mxu0 %v103
    %1779 = vmatpush.msra.mxu0 %v102
    %1780 = vmatpush.msra.mxu0 %v101
    %1781 = vmatpush.msra.mxu0 %v100
    %1782 = vmatpush.msra.mxu0 %v99
    %1783 = vmatpush.msra.mxu0 %v98
    %1784 = vmatpush.msra.mxu0 %v97
    %1785 = vmatpush.msra.mxu0 %v96
    %1786 = vmatpush.msra.mxu0 %v95
    %1787 = vmatpush.msra.mxu0 %v94
    %1788 = vmatpush.msra.mxu0 %v93
    %1789 = vmatpush.msra.mxu0 %v92
    %1790 = vmatpush.msra.mxu0 %v91
    %1791 = vmatmul.f32.gmra.mxu0 %v1191
    %v1792 = vpop.f32.mrf.mxu0
    %v1793 = vadd.f32 0.0, %v1792
    %1794 = vdwg.mxu0
    %v1795 = vadd.f32 %v1774, %v1793
    %v1796 = vadd.f32 %v1795, %v1363
    %v1797 = vmax.f32 %v1796, 0.0
    %v1799 = vsel %vm1451, %v1797, 0
    %1801 = vmatpush.msra.mxu0 0.0
    %1802 = vmatpush.msra.mxu0 0.0
    %1803 = vmatpush.msra.mxu0 0.0
    %1804 = vmatpush.msra.mxu0 0.0
    %1805 = vmatpush.msra.mxu0 0.0
    %1806 = vmatpush.msra.mxu0 0.0
    %1807 = vmatpush.msra.mxu0 0.0
    %1808 = vmatpush.msra.mxu0 0.0
    %1809 = vmatpush.msra.mxu0 %v150
    %1810 = vmatpush.msra.mxu0 %v149
    %1811 = vmatpush.msra.mxu0 %v148
    %1812 = vmatpush.msra.mxu0 %v147
    %1813 = vmatpush.msra.mxu0 %v146
    %1814 = vmatpush.msra.mxu0 %v145
    %1815 = vmatpush.msra.mxu0 %v144
    %1816 = vmatpush.msra.mxu0 %v143
    %1817 = vmatmul.f32.gmra.mxu0 %v1799
    %v1818 = vpop.f32.mrf.mxu0
    %v1819 = vadd.f32 0.0, %v1818
    %1820 = vdwg.mxu0
    %v1821 = vadd.f32 %v1713, %v1819
    %1822 = vmatpush.msra.mxu0 %v72
    %1823 = vmatpush.msra.mxu0 %v71
    %1824 = vmatpush.msra.mxu0 %v70
    %1825 = vmatpush.msra.mxu0 %v69
    %1826 = vmatpush.msra.mxu0 %v68
    %1827 = vmatpush.msra.mxu0 %v67
    %1828 = vmatpush.msra.mxu0 %v66
    %1829 = vmatpush.msra.mxu0 %v65
    %1830 = vmatpush.msra.mxu0 %v64
    %1831 = vmatpush.msra.mxu0 %v63
    %1832 = vmatpush.msra.mxu0 %v62
    %1833 = vmatpush.msra.mxu0 %v61
    %1834 = vmatpush.msra.mxu0 %v60
    %1835 = vmatpush.msra.mxu0 %v59
    %1836 = vmatpush.msra.mxu0 %v58
    %1837 = vmatpush.msra.mxu0 %v57
    %1838 = vmatmul.f32.gmra.mxu0 %v927
    %v1839 = vpop.f32.mrf.mxu0
    %v1840 = vadd.f32 0.0, %v1839
    %1841 = vdwg.mxu0
    %1842 = vmatpush.msra.mxu0 %v55
    %1843 = vmatpush.msra.mxu0 %v54
    %1844 = vmatpush.msra.mxu0 %v53
    %1845 = vmatpush.msra.mxu0 %v52
    %1846 = vmatpush.msra.mxu0 %v51
    %1847 = vmatpush.msra.mxu0 %v50
    %1848 = vmatpush.msra.mxu0 %v49
    %1849 = vmatpush.msra.mxu0 %v48
    %1850 = vmatpush.msra.mxu0 %v47
    %1851 = vmatpush.msra.mxu0 %v46
    %1852 = vmatpush.msra.mxu0 %v45
    %1853 = vmatpush.msra.mxu0 %v44
    %1854 = vmatpush.msra.mxu0 %v43
    %1855 = vmatpush.msra.mxu0 %v42
    %1856 = vmatpush.msra.mxu0 %v41
    %1857 = vmatpush.msra.mxu0 %v40
    %1858 = vmatmul.f32.gmra.mxu0 %v839
    %v1859 = vpop.f32.mrf.mxu0
    %v1860 = vadd.f32 %v1840, %v1859
    %1861 = vdwg.mxu0
    %1862 = vmatpush.msra.mxu0 %v89
    %1863 = vmatpush.msra.mxu0 %v88
    %1864 = vmatpush.msra.mxu0 %v87
    %1865 = vmatpush.msra.mxu0 %v86
    %1866 = vmatpush.msra.mxu0 %v85
    %1867 = vmatpush.msra.mxu0 %v84
    %1868 = vmatpush.msra.mxu0 %v83
    %1869 = vmatpush.msra.mxu0 %v82
    %1870 = vmatpush.msra.mxu0 %v81
    %1871 = vmatpush.msra.mxu0 %v80
    %1872 = vmatpush.msra.mxu0 %v79
    %1873 = vmatpush.msra.mxu0 %v78
    %1874 = vmatpush.msra.mxu0 %v77
    %1875 = vmatpush.msra.mxu0 %v76
    %1876 = vmatpush.msra.mxu0 %v75
    %1877 = vmatpush.msra.mxu0 %v74
    %1878 = vmatmul.f32.gmra.mxu0 %v1191
    %v1879 = vpop.f32.mrf.mxu0
    %v1880 = vadd.f32 0.0, %v1879
    %1881 = vdwg.mxu0
    %v1882 = vadd.f32 %v1860, %v1880
    %1883 = vmatpush.msra.mxu0 %v106
    %1884 = vmatpush.msra.mxu0 %v105
    %1885 = vmatpush.msra.mxu0 %v104
    %1886 = vmatpush.msra.mxu0 %v103
    %1887 = vmatpush.msra.mxu0 %v102
    %1888 = vmatpush.msra.mxu0 %v101
    %1889 = vmatpush.msra.mxu0 %v100
    %1890 = vmatpush.msra.mxu0 %v99
    %1891 = vmatpush.msra.mxu0 %v98
    %1892 = vmatpush.msra.mxu0 %v97
    %1893 = vmatpush.msra.mxu0 %v96
    %1894 = vmatpush.msra.mxu0 %v95
    %1895 = vmatpush.msra.mxu0 %v94
    %1896 = vmatpush.msra.mxu0 %v93
    %1897 = vmatpush.msra.mxu0 %v92
    %1898 = vmatpush.msra.mxu0 %v91
    %1899 = vmatmul.f32.gmra.mxu0 %v1279
    %v1900 = vpop.f32.mrf.mxu0
    %v1901 = vadd.f32 0.0, %v1900
    %1902 = vdwg.mxu0
    %v1903 = vadd.f32 %v1882, %v1901
    %v1904 = vadd.f32 %v1903, %v1363
    %v1905 = vmax.f32 %v1904, 0.0
    %v1907 = vsel %vm1451, %v1905, 0
    %1909 = vmatpush.msra.mxu0 0.0
    %1910 = vmatpush.msra.mxu0 0.0
    %1911 = vmatpush.msra.mxu0 0.0
    %1912 = vmatpush.msra.mxu0 0.0
    %1913 = vmatpush.msra.mxu0 0.0
    %1914 = vmatpush.msra.mxu0 0.0
    %1915 = vmatpush.msra.mxu0 0.0
    %1916 = vmatpush.msra.mxu0 0.0
    %1917 = vmatpush.msra.mxu0 %v159
    %1918 = vmatpush.msra.mxu0 %v158
    %1919 = vmatpush.msra.mxu0 %v157
    %1920 = vmatpush.msra.mxu0 %v156
    %1921 = vmatpush.msra.mxu0 %v155
    %1922 = vmatpush.msra.mxu0 %v154
    %1923 = vmatpush.msra.mxu0 %v153
    %1924 = vmatpush.msra.mxu0 %v152
    %1925 = vmatmul.f32.gmra.mxu0 %v1907
    %v1926 = vpop.f32.mrf.mxu0
    %v1927 = vadd.f32 0.0, %v1926
    %1928 = vdwg.mxu0
    %v1929 = vadd.f32 %v1821, %v1927
    %v1930 = vld [vmem:[%s6] sm:$0x1]
    %v1932 = vperm.slane %v1930, 0
    %v1934 = vadd.f32 %v1929, %v1932
    %v1935 = vmax.f32 %v1934, 0.0
    %v1936 = vld [vmem:[%s7] sm:$0xff]
    %v1937 = vld [vmem:[%s7 + $0x8] sm:$0xff]
    %v1938 = vld [vmem:[%s7 + $0x10] sm:$0xff]
    %v1939 = vld [vmem:[%s7 + $0x18] sm:$0xff]
    %v1940 = vld [vmem:[%s7 + $0x20] sm:$0xff]
    %v1941 = vld [vmem:[%s7 + $0x28] sm:$0xff]
    %v1942 = vld [vmem:[%s7 + $0x30] sm:$0xff]
    %v1943 = vld [vmem:[%s7 + $0x38] sm:$0xff]
    %v1944 = vld [vmem:[%s8] sm:$0x1]
    %v1946 = vperm.slane %v1944, 0
    %v1949 = vsel %vm1451, %v1935, 0
    %1951 = vmatpush.msra.mxu0 0.0
    %1952 = vmatpush.msra.mxu0 0.0
    %1953 = vmatpush.msra.mxu0 0.0
    %1954 = vmatpush.msra.mxu0 0.0
    %1955 = vmatpush.msra.mxu0 0.0
    %1956 = vmatpush.msra.mxu0 0.0
    %1957 = vmatpush.msra.mxu0 0.0
    %1958 = vmatpush.msra.mxu0 0.0
    %1959 = vmatpush.msra.mxu0 %v1943
    %1960 = vmatpush.msra.mxu0 %v1942
    %1961 = vmatpush.msra.mxu0 %v1941
    %1962 = vmatpush.msra.mxu0 %v1940
    %1963 = vmatpush.msra.mxu0 %v1939
    %1964 = vmatpush.msra.mxu0 %v1938
    %1965 = vmatpush.msra.mxu0 %v1937
    %1966 = vmatpush.msra.mxu0 %v1936
    %1967 = vmatmul.f32.gmra.mxu0 %v1949
    %v1968 = vpop.f32.mrf.mxu0
    %v1969 = vadd.f32 %v1946, %v1968
    %1970 = vdwg.mxu0
    %vm1971 = vcmask 52224
    %1972 = vst.msk [vmem:[#allocation2] sm:$0xf] %vm1971, %v1969
    // Predicated region
    $region38: #{dqn_forward.1} parent=1 // pred_check
      _
    $region39: #{dqn_forward.1} parent=1 // pred_check_branch
      %1974 = sbr.rel (0) target = $region41
    $region40: #{dqn_forward.1} parent=1 // pred_region
      %1976 = vsyncadd [#allocation3], 0
      %s1978 = sshll.u32 [#allocation2], 4
      %s1979 = int_to_ptr.vmem [resolvable:$true] %s1978
      %s1980 = sshll.u32 %s9, 4
      %s1981 = int_to_ptr.hbm [resolvable:$true] %s1980
      %1983 = dma.vmem_to_hbm [thread:$0]  %s1979, 64, %s1981, [#allocation3]
    $region41: #{dqn_forward.1} parent=1 // pred_fallthru
      _
    // Predicated region
    $region42: #{dqn_forward.1} parent=1 // pred_check
      _
    $region43: #{dqn_forward.1} parent=1 // pred_check_branch
      %1985 = sbr.rel (0) target = $region45
    $region44: #{dqn_forward.1} parent=1 // pred_region
      %1987 = dma.done [#allocation3], 64
    $region45: #{dqn_forward.1} parent=1 // pred_fallthru
      _
    %1988 = vsyncpa [#allocation3], 1

</llo_original>
